<compile_context>
chip_gen: v5e
topology: v5e:2x2
jax: 0.10.0
libtpu: 0.0.40
codegen_flags: <defaults>
</compile_context>

<pallas_src>
import copy
import functools

import jax
import jax.numpy as jnp
from jax.experimental import pallas as pl
from jax.experimental.pallas import tpu as pltpu


# ------------------------------------------------------------------ helpers
def _round_up(n, m):
    return ((n + m - 1) // m) * m


def _pad2(x, rows, cols):
    out = jnp.zeros((rows, cols), x.dtype)
    return out.at[: x.shape[0], : x.shape[1]].set(x)


def _full_spec(shape):
    # whole array as a single block (block_shape == full array dims is allowed)
    return pl.BlockSpec(shape, lambda i: (0,) * len(shape))


# ------------------------------------------------------------------ fused kernel
def bgrl_fused_kernel(
    a1_ref, a2_ref, d1_ref, d2_ref, f_ref,
    w1_ref, b1_ref, al1_ref,
    w2_ref, b2_ref, al2_ref,
    wp1_ref, bp1_ref, alp_ref,
    wp2_ref, bp2_ref,
    loss_ref,
    *, n_valid, n_pad, h_pad,
):
    f32 = jnp.float32
    bf16 = jnp.bfloat16

    a1 = a1_ref[...]                      # [Np, Np] bf16  (A_drop + I), view 1
    a2 = a2_ref[...]                      # [Np, Np] bf16  (A_drop + I), view 2
    d1 = d1_ref[...]                      # [Np, 1]  f32   D^{-1/2}, view 1
    d2 = d2_ref[...]                      # [Np, 1]  f32   D^{-1/2}, view 2

    def prelu(h, alpha_row):
        return jnp.where(h >= 0.0, h, alpha_row * h)

    def aggregate(z):
        # A_hat @ z = dinv * (A @ (dinv * z)), per view; bf16 MXU, f32 accumulate.
        z1 = (z[:n_pad, :] * d1).astype(bf16)
        z2 = (z[n_pad:, :] * d2).astype(bf16)
        g1 = jnp.dot(a1, z1, preferred_element_type=f32) * d1
        g2 = jnp.dot(a2, z2, preferred_element_type=f32) * d2
        return jnp.concatenate([g1, g2], axis=0)

    # -- encoder layer 1: rows = [view1 ; view2], cols = [student | teacher] --
    x = f_ref[...].astype(bf16)                                   # [2Np, Dp]
    z = jnp.dot(x, w1_ref[...], preferred_element_type=f32)       # [2Np, 2Hp]
    h = prelu(aggregate(z) + b1_ref[...], al1_ref[...])

    # -- encoder layer 2 (block-diagonal weights keep the two encoders separate) --
    z = jnp.dot(h.astype(bf16), w2_ref[...], preferred_element_type=f32)
    h = prelu(aggregate(z) + b2_ref[...], al2_ref[...])           # [2Np, 2Hp]

    h_student = h[:, :h_pad]              # [2Np, Hp]
    h_teacher = h[:, h_pad:]              # [2Np, Hp]  (teacher = no_grad path)

    # -- student predictor: Linear -> PReLU -> Linear, both views at once --
    p = jnp.dot(h_student.astype(bf16), wp1_ref[...], preferred_element_type=f32)
    p = prelu(p + bp1_ref[...], alp_ref[...])
    pred = jnp.dot(p.astype(bf16), wp2_ref[...], preferred_element_type=f32) + bp2_ref[...]

    # -- BGRL cosine loss (F.normalize eps = 1e-12), all f32 --
    v1_pred, v2_pred = pred[:n_pad, :], pred[n_pad:, :]
    v1_teach, v2_teach = h_teacher[:n_pad, :], h_teacher[n_pad:, :]

    def cos_loss(xv, yv):
        xn = jnp.maximum(jnp.sqrt(jnp.sum(xv * xv, axis=-1, keepdims=True)), 1e-12)
        yn = jnp.maximum(jnp.sqrt(jnp.sum(yv * yv, axis=-1, keepdims=True)), 1e-12)
        dot = jnp.sum(xv * yv, axis=-1, keepdims=True)
        return 2.0 - 2.0 * dot / (xn * yn)                        # [Np, 1]

    per_node = cos_loss(v1_pred, v2_teach) + cos_loss(v2_pred, v1_teach)
    row = jax.lax.broadcasted_iota(jnp.int32, (n_pad, 1), 0)
    valid = (row < n_valid).astype(f32)                           # mask padded nodes
    total = jnp.sum(per_node * valid, axis=0, keepdims=True)      # (1, 1)
    loss_ref[...] = total / f32(n_valid)


def bgrl_fused(a1, a2, d1, d2, f_stack, w1, b1, al1, w2, b2, al2,
               wp1, bp1, alp, wp2, bp2, *, n_valid):
    n_pad = a1.shape[0]
    h_pad = wp1.shape[0]
    args = (a1, a2, d1, d2, f_stack, w1, b1, al1, w2, b2, al2,
            wp1, bp1, alp, wp2, bp2)
    kernel = functools.partial(
        bgrl_fused_kernel, n_valid=n_valid, n_pad=n_pad, h_pad=h_pad)
    return pl.pallas_call(
        kernel,
        out_shape=jax.ShapeDtypeStruct((1, 1), jnp.float32),
        grid=(1,),
        in_specs=[_full_spec(a.shape) for a in args],
        out_specs=_full_spec((1, 1)),
        compiler_params=pltpu.CompilerParams(
            dimension_semantics=("arbitrary",)),
    )(*args)


# ------------------------------------------------------------------ model glue
def xavier_uniform(key, fan_in, fan_out):
    limit = jnp.sqrt(6.0 / (fan_in + fan_out)).astype(jnp.float32)
    return jax.random.uniform(
        key, (fan_in, fan_out), jnp.float32, minval=-limit, maxval=limit
    )


def init_params(key, in_dim, num_hidden, num_layers, pred_hid):
    keys = jax.random.split(key, num_layers + 2)
    enc = []
    d_in = in_dim
    for l in range(num_layers):
        w = xavier_uniform(keys[l], d_in, num_hidden)
        b = jnp.zeros((1, num_hidden), jnp.float32)
        alpha = jnp.full((1, 1), 0.25, jnp.float32)  # PReLU init
        enc.append({"w": w, "b": b, "alpha": alpha})
        d_in = num_hidden
    student_encoder = enc
    teacher_encoder = copy.deepcopy(enc)  # deepcopy semantics of the PyTorch module
    predictor_params = {
        "w1": xavier_uniform(keys[-2], num_hidden, pred_hid),
        "b1": jnp.full((1, pred_hid), 0.01, jnp.float32),  # init_weights: bias = 0.01
        "alpha": jnp.full((1, 1), 0.25, jnp.float32),
        "w2": xavier_uniform(keys[-1], pred_hid, num_hidden),
        "b2": jnp.full((1, num_hidden), 0.01, jnp.float32),
    }
    return {
        "student": student_encoder,
        "teacher": teacher_encoder,
        "predictor": predictor_params,
    }


def random_aug(key, adj_no_self_loop, x, drop_feature_rate, drop_edge_rate):
    """Drop edges / feature dims, add self loops; return raw A, D^{-1/2}, feat."""
    k_e, k_f = jax.random.split(key)
    edge_keep = (
        jax.random.uniform(k_e, adj_no_self_loop.shape) >= drop_edge_rate
    ).astype(jnp.float32)
    adj = adj_no_self_loop * edge_keep
    feat_keep = (
        jax.random.uniform(k_f, (1, x.shape[1])) >= drop_feature_rate
    ).astype(jnp.float32)
    feat = x * feat_keep

    a = adj + jnp.eye(adj.shape[0], dtype=jnp.float32)   # add self loops
    deg = jnp.sum(a, axis=1)
    dinv = jnp.where(deg > 0.0, jax.lax.rsqrt(jnp.maximum(deg, 1e-12)), 0.0)
    # symmetric normalization is applied on the fly inside the Pallas kernel
    return a, dinv, feat


@jax.jit
def bgrl_forward(params, adj_no_self_loop, x, aug_key,
                 drop_feature_rate_1=0.5, drop_edge_rate_1=0.5,
                 drop_feature_rate_2=0.5, drop_edge_rate_2=0.5):
    n = adj_no_self_loop.shape[0]
    din = x.shape[1]
    s_layers = params["student"]
    t_layers = params["teacher"]
    assert len(s_layers) == 2, "fused kernel is specialized to num_layers == 2"
    h = s_layers[0]["w"].shape[1]
    p_hid = params["predictor"]["w1"].shape[1]

    n_pad = _round_up(n, 8)
    d_pad = _round_up(din, 128)
    h_pad = _round_up(h, 128)
    p_pad = _round_up(p_hid, 128)

    k1, k2 = jax.random.split(aug_key)
    a1, dinv1, f1 = random_aug(k1, adj_no_self_loop, x,
                               drop_feature_rate_1, drop_edge_rate_1)
    a2, dinv2, f2 = random_aug(k2, adj_no_self_loop, x,
                               drop_feature_rate_2, drop_edge_rate_2)

    # adjacency entries are 0/1 -> exact in bf16
    a1p = _pad2(a1, n_pad, n_pad).astype(jnp.bfloat16)
    a2p = _pad2(a2, n_pad, n_pad).astype(jnp.bfloat16)
    d1p = _pad2(dinv1[:, None], n_pad, 1)
    d2p = _pad2(dinv2[:, None], n_pad, 1)
    f_stack = jnp.concatenate(
        [_pad2(f1, n_pad, d_pad), _pad2(f2, n_pad, d_pad)], axis=0)   # [2Np, Dp]

    s1, s2 = s_layers
    t1, t2 = t_layers
    pd = params["predictor"]

    # layer 1: student || teacher along the output-feature axis
    w1 = jnp.zeros((d_pad, 2 * h_pad), jnp.float32)
    w1 = w1.at[:din, :h].set(s1["w"]).at[:din, h_pad:h_pad + h].set(t1["w"])
    b1 = jnp.zeros((1, 2 * h_pad), jnp.float32)
    b1 = b1.at[:, :h].set(s1["b"]).at[:, h_pad:h_pad + h].set(t1["b"])
    al1 = jnp.concatenate([jnp.broadcast_to(s1["alpha"], (1, h_pad)),
                           jnp.broadcast_to(t1["alpha"], (1, h_pad))], axis=1)

    # layer 2: block-diagonal so the two encoders stay independent
    w2 = jnp.zeros((2 * h_pad, 2 * h_pad), jnp.float32)
    w2 = w2.at[:h, :h].set(s2["w"]).at[h_pad:h_pad + h, h_pad:h_pad + h].set(t2["w"])
    b2 = jnp.zeros((1, 2 * h_pad), jnp.float32)
    b2 = b2.at[:, :h].set(s2["b"]).at[:, h_pad:h_pad + h].set(t2["b"])
    al2 = jnp.concatenate([jnp.broadcast_to(s2["alpha"], (1, h_pad)),
                           jnp.broadcast_to(t2["alpha"], (1, h_pad))], axis=1)

    # predictor (student only)
    wp1 = jnp.zeros((h_pad, p_pad), jnp.float32).at[:h, :p_hid].set(pd["w1"])
    bp1 = jnp.zeros((1, p_pad), jnp.float32).at[:, :p_hid].set(pd["b1"])
    alp = jnp.broadcast_to(pd["alpha"], (1, p_pad))
    wp2 = jnp.zeros((p_pad, h_pad), jnp.float32).at[:p_hid, :h].set(pd["w2"])
    bp2 = jnp.zeros((1, h_pad), jnp.float32).at[:, :h].set(pd["b2"])

    loss = bgrl_fused(
        a1p, a2p, d1p, d2p, f_stack,
        w1.astype(jnp.bfloat16), b1, al1,
        w2.astype(jnp.bfloat16), b2, al2,
        wp1.astype(jnp.bfloat16), bp1, alp,
        wp2.astype(jnp.bfloat16), bp2,
        n_valid=n,
    )
    return loss[0, 0]


# ------------------------------------------------------------------ main
if __name__ == "__main__":
    key = jax.random.PRNGKey(0)
    k_param, k_adj, k_x, k_aug = jax.random.split(key, 4)

    N = 16          # nodes
    in_dim = 8      # input feature dim
    num_hidden = 32
    num_layers = 2
    pred_hid = 16

    # random symmetric adjacency without self loops
    raw = (jax.random.uniform(k_adj, (N, N)) < 0.3).astype(jnp.float32)
    adj = jnp.clip(raw + raw.T, 0.0, 1.0)
    adj = adj * (1.0 - jnp.eye(N, dtype=jnp.float32))  # g.remove_self_loop()

    x = jax.random.normal(k_x, (N, in_dim), jnp.float32)

    params = init_params(k_param, in_dim, num_hidden, num_layers, pred_hid)

    loss = bgrl_forward(params, adj, x, k_aug)
    loss = jax.block_until_ready(loss)
    assert loss.shape == () and jnp.isfinite(loss)
    print("KERNEL_OK")
</pallas_src>

<mosaic_0001>
module attributes {stable_mosaic.version = 11 : i64} {
  func.func @bgrl_fused_kernel(%arg0: i32, %arg1: memref<16x16xbf16, #tpu.memory_space<vmem>>, %arg2: memref<16x16xbf16, #tpu.memory_space<vmem>>, %arg3: memref<16x1xf32, #tpu.memory_space<vmem>>, %arg4: memref<16x1xf32, #tpu.memory_space<vmem>>, %arg5: memref<32x128xf32, #tpu.memory_space<vmem>>, %arg6: memref<128x256xbf16, #tpu.memory_space<vmem>>, %arg7: memref<1x256xf32, #tpu.memory_space<vmem>>, %arg8: memref<1x256xf32, #tpu.memory_space<vmem>>, %arg9: memref<256x256xbf16, #tpu.memory_space<vmem>>, %arg10: memref<1x256xf32, #tpu.memory_space<vmem>>, %arg11: memref<1x256xf32, #tpu.memory_space<vmem>>, %arg12: memref<128x128xbf16, #tpu.memory_space<vmem>>, %arg13: memref<1x128xf32, #tpu.memory_space<vmem>>, %arg14: memref<1x128xf32, #tpu.memory_space<vmem>>, %arg15: memref<128x128xbf16, #tpu.memory_space<vmem>>, %arg16: memref<1x128xf32, #tpu.memory_space<vmem>>, %arg17: memref<1x1xf32, #tpu.memory_space<vmem>>) attributes {dimension_semantics = [#tpu.dimension_semantics<arbitrary>], iteration_bounds = array<i64: 1>, scalar_prefetch = 0 : i64, scratch_operands = 0 : i64, tpu.core_type = #tpu.core_type<tc>, window_params = [{pipeline_mode = #tpu.pipeline_mode<synchronous>, transform_indices = @transform_0, window_bounds = array<i64: 16, 16>}, {pipeline_mode = #tpu.pipeline_mode<synchronous>, transform_indices = @transform_1, window_bounds = array<i64: 16, 16>}, {pipeline_mode = #tpu.pipeline_mode<synchronous>, transform_indices = @transform_2, window_bounds = array<i64: 16, 1>}, {pipeline_mode = #tpu.pipeline_mode<synchronous>, transform_indices = @transform_3, window_bounds = array<i64: 16, 1>}, {pipeline_mode = #tpu.pipeline_mode<synchronous>, transform_indices = @transform_4, window_bounds = array<i64: 32, 128>}, {pipeline_mode = #tpu.pipeline_mode<synchronous>, transform_indices = @transform_5, window_bounds = array<i64: 128, 256>}, {pipeline_mode = #tpu.pipeline_mode<synchronous>, transform_indices = @transform_6, window_bounds = array<i64: 1, 256>}, {pipeline_mode = #tpu.pipeline_mode<synchronous>, transform_indices = @transform_7, window_bounds = array<i64: 1, 256>}, {pipeline_mode = #tpu.pipeline_mode<synchronous>, transform_indices = @transform_8, window_bounds = array<i64: 256, 256>}, {pipeline_mode = #tpu.pipeline_mode<synchronous>, transform_indices = @transform_9, window_bounds = array<i64: 1, 256>}, {pipeline_mode = #tpu.pipeline_mode<synchronous>, transform_indices = @transform_10, window_bounds = array<i64: 1, 256>}, {pipeline_mode = #tpu.pipeline_mode<synchronous>, transform_indices = @transform_11, window_bounds = array<i64: 128, 128>}, {pipeline_mode = #tpu.pipeline_mode<synchronous>, transform_indices = @transform_12, window_bounds = array<i64: 1, 128>}, {pipeline_mode = #tpu.pipeline_mode<synchronous>, transform_indices = @transform_13, window_bounds = array<i64: 1, 128>}, {pipeline_mode = #tpu.pipeline_mode<synchronous>, transform_indices = @transform_14, window_bounds = array<i64: 128, 128>}, {pipeline_mode = #tpu.pipeline_mode<synchronous>, transform_indices = @transform_15, window_bounds = array<i64: 1, 128>}, {pipeline_mode = #tpu.pipeline_mode<synchronous>, transform_indices = @transform_16, window_bounds = array<i64: 1, 1>}]} {
    %c0 = arith.constant 0 : index
    %c0_0 = arith.constant 0 : index
    %0 = vector.load %arg1[%c0, %c0_0] : memref<16x16xbf16, #tpu.memory_space<vmem>>, vector<16x16xbf16>
    %c0_1 = arith.constant 0 : index
    %c0_2 = arith.constant 0 : index
    %1 = vector.load %arg2[%c0_1, %c0_2] : memref<16x16xbf16, #tpu.memory_space<vmem>>, vector<16x16xbf16>
    %c0_3 = arith.constant 0 : index
    %c0_4 = arith.constant 0 : index
    %2 = vector.load %arg3[%c0_3, %c0_4] : memref<16x1xf32, #tpu.memory_space<vmem>>, vector<16x1xf32>
    %c0_5 = arith.constant 0 : index
    %c0_6 = arith.constant 0 : index
    %3 = vector.load %arg4[%c0_5, %c0_6] : memref<16x1xf32, #tpu.memory_space<vmem>>, vector<16x1xf32>
    %c0_7 = arith.constant 0 : index
    %c0_8 = arith.constant 0 : index
    %4 = vector.load %arg5[%c0_7, %c0_8] : memref<32x128xf32, #tpu.memory_space<vmem>>, vector<32x128xf32>
    %5 = arith.truncf %4 : vector<32x128xf32> to vector<32x128xbf16>
    %c0_9 = arith.constant 0 : index
    %c0_10 = arith.constant 0 : index
    %6 = vector.load %arg6[%c0_9, %c0_10] : memref<128x256xbf16, #tpu.memory_space<vmem>>, vector<128x256xbf16>
    %cst = arith.constant dense<0.000000e+00> : vector<32x256xf32>
    %7 = tpu.matmul %5, %6, %cst {dimension_numbers = #tpu.dot_dimension_numbers<[1], [0], [0], [1], [0, 0, 1, 1], [], []>} : vector<32x128xbf16>, vector<128x256xbf16>, vector<32x256xf32> -> vector<32x256xf32>
    %8 = vector.extract_strided_slice %7 {offsets = [0, 0], sizes = [16, 256], strides = [1, 1]} : vector<32x256xf32> to vector<16x256xf32>
    %9 = vector.broadcast %2 : vector<16x1xf32> to vector<16x256xf32>
    %10 = arith.mulf %8, %9 : vector<16x256xf32>
    %11 = arith.truncf %10 : vector<16x256xf32> to vector<16x256xbf16>
    %12 = vector.extract_strided_slice %7 {offsets = [16, 0], sizes = [16, 256], strides = [1, 1]} : vector<32x256xf32> to vector<16x256xf32>
    %13 = vector.broadcast %3 : vector<16x1xf32> to vector<16x256xf32>
    %14 = arith.mulf %12, %13 : vector<16x256xf32>
    %15 = arith.truncf %14 : vector<16x256xf32> to vector<16x256xbf16>
    %cst_11 = arith.constant dense<0.000000e+00> : vector<16x256xf32>
    %16 = tpu.matmul %0, %11, %cst_11 {dimension_numbers = #tpu.dot_dimension_numbers<[1], [0], [0], [1], [0, 0, 1, 1], [], []>} : vector<16x16xbf16>, vector<16x256xbf16>, vector<16x256xf32> -> vector<16x256xf32>
    %17 = vector.broadcast %2 : vector<16x1xf32> to vector<16x256xf32>
    %18 = arith.mulf %16, %17 : vector<16x256xf32>
    %cst_12 = arith.constant dense<0.000000e+00> : vector<16x256xf32>
    %19 = tpu.matmul %1, %15, %cst_12 {dimension_numbers = #tpu.dot_dimension_numbers<[1], [0], [0], [1], [0, 0, 1, 1], [], []>} : vector<16x16xbf16>, vector<16x256xbf16>, vector<16x256xf32> -> vector<16x256xf32>
    %20 = vector.broadcast %3 : vector<16x1xf32> to vector<16x256xf32>
    %21 = arith.mulf %19, %20 : vector<16x256xf32>
    %22 = tpu.concatenate %18, %21 in 0 : vector<16x256xf32>, vector<16x256xf32> -> vector<32x256xf32>
    %c0_13 = arith.constant 0 : index
    %c0_14 = arith.constant 0 : index
    %23 = vector.load %arg7[%c0_13, %c0_14] : memref<1x256xf32, #tpu.memory_space<vmem>>, vector<1x256xf32>
    %24 = vector.broadcast %23 : vector<1x256xf32> to vector<32x256xf32>
    %25 = arith.addf %22, %24 : vector<32x256xf32>
    %c0_15 = arith.constant 0 : index
    %c0_16 = arith.constant 0 : index
    %26 = vector.load %arg8[%c0_15, %c0_16] : memref<1x256xf32, #tpu.memory_space<vmem>>, vector<1x256xf32>
    %cst_17 = arith.constant 0.000000e+00 : f32
    %27 = vector.broadcast %cst_17 : f32 to vector<32x256xf32>
    %28 = arith.cmpf oge, %25, %27 : vector<32x256xf32>
    %29 = vector.broadcast %26 : vector<1x256xf32> to vector<32x256xf32>
    %30 = arith.mulf %29, %25 : vector<32x256xf32>
    %31 = arith.select %28, %25, %30 : vector<32x256xi1>, vector<32x256xf32>
    %32 = arith.truncf %31 : vector<32x256xf32> to vector<32x256xbf16>
    %c0_18 = arith.constant 0 : index
    %c0_19 = arith.constant 0 : index
    %33 = vector.load %arg9[%c0_18, %c0_19] : memref<256x256xbf16, #tpu.memory_space<vmem>>, vector<256x256xbf16>
    %cst_20 = arith.constant dense<0.000000e+00> : vector<32x256xf32>
    %34 = tpu.matmul %32, %33, %cst_20 {dimension_numbers = #tpu.dot_dimension_numbers<[1], [0], [0], [1], [0, 0, 1, 1], [], []>} : vector<32x256xbf16>, vector<256x256xbf16>, vector<32x256xf32> -> vector<32x256xf32>
    %35 = vector.extract_strided_slice %34 {offsets = [0, 0], sizes = [16, 256], strides = [1, 1]} : vector<32x256xf32> to vector<16x256xf32>
    %36 = vector.broadcast %2 : vector<16x1xf32> to vector<16x256xf32>
    %37 = arith.mulf %35, %36 : vector<16x256xf32>
    %38 = arith.truncf %37 : vector<16x256xf32> to vector<16x256xbf16>
    %39 = vector.extract_strided_slice %34 {offsets = [16, 0], sizes = [16, 256], strides = [1, 1]} : vector<32x256xf32> to vector<16x256xf32>
    %40 = vector.broadcast %3 : vector<16x1xf32> to vector<16x256xf32>
    %41 = arith.mulf %39, %40 : vector<16x256xf32>
    %42 = arith.truncf %41 : vector<16x256xf32> to vector<16x256xbf16>
    %cst_21 = arith.constant dense<0.000000e+00> : vector<16x256xf32>
    %43 = tpu.matmul %0, %38, %cst_21 {dimension_numbers = #tpu.dot_dimension_numbers<[1], [0], [0], [1], [0, 0, 1, 1], [], []>} : vector<16x16xbf16>, vector<16x256xbf16>, vector<16x256xf32> -> vector<16x256xf32>
    %44 = vector.broadcast %2 : vector<16x1xf32> to vector<16x256xf32>
    %45 = arith.mulf %43, %44 : vector<16x256xf32>
    %cst_22 = arith.constant dense<0.000000e+00> : vector<16x256xf32>
    %46 = tpu.matmul %1, %42, %cst_22 {dimension_numbers = #tpu.dot_dimension_numbers<[1], [0], [0], [1], [0, 0, 1, 1], [], []>} : vector<16x16xbf16>, vector<16x256xbf16>, vector<16x256xf32> -> vector<16x256xf32>
    %47 = vector.broadcast %3 : vector<16x1xf32> to vector<16x256xf32>
    %48 = arith.mulf %46, %47 : vector<16x256xf32>
    %49 = tpu.concatenate %45, %48 in 0 : vector<16x256xf32>, vector<16x256xf32> -> vector<32x256xf32>
    %c0_23 = arith.constant 0 : index
    %c0_24 = arith.constant 0 : index
    %50 = vector.load %arg10[%c0_23, %c0_24] : memref<1x256xf32, #tpu.memory_space<vmem>>, vector<1x256xf32>
    %51 = vector.broadcast %50 : vector<1x256xf32> to vector<32x256xf32>
    %52 = arith.addf %49, %51 : vector<32x256xf32>
    %c0_25 = arith.constant 0 : index
    %c0_26 = arith.constant 0 : index
    %53 = vector.load %arg11[%c0_25, %c0_26] : memref<1x256xf32, #tpu.memory_space<vmem>>, vector<1x256xf32>
    %cst_27 = arith.constant 0.000000e+00 : f32
    %54 = vector.broadcast %cst_27 : f32 to vector<32x256xf32>
    %55 = arith.cmpf oge, %52, %54 : vector<32x256xf32>
    %56 = vector.broadcast %53 : vector<1x256xf32> to vector<32x256xf32>
    %57 = arith.mulf %56, %52 : vector<32x256xf32>
    %58 = arith.select %55, %52, %57 : vector<32x256xi1>, vector<32x256xf32>
    %59 = vector.extract_strided_slice %58 {offsets = [0, 0], sizes = [32, 128], strides = [1, 1]} : vector<32x256xf32> to vector<32x128xf32>
    %60 = vector.extract_strided_slice %58 {offsets = [0, 128], sizes = [32, 128], strides = [1, 1]} : vector<32x256xf32> to vector<32x128xf32>
    %61 = arith.truncf %59 : vector<32x128xf32> to vector<32x128xbf16>
    %c0_28 = arith.constant 0 : index
    %c0_29 = arith.constant 0 : index
    %62 = vector.load %arg12[%c0_28, %c0_29] : memref<128x128xbf16, #tpu.memory_space<vmem>>, vector<128x128xbf16>
    %cst_30 = arith.constant dense<0.000000e+00> : vector<32x128xf32>
    %63 = tpu.matmul %61, %62, %cst_30 {dimension_numbers = #tpu.dot_dimension_numbers<[1], [0], [0], [1], [0, 0, 1, 1], [], []>} : vector<32x128xbf16>, vector<128x128xbf16>, vector<32x128xf32> -> vector<32x128xf32>
    %c0_31 = arith.constant 0 : index
    %c0_32 = arith.constant 0 : index
    %64 = vector.load %arg13[%c0_31, %c0_32] : memref<1x128xf32, #tpu.memory_space<vmem>>, vector<1x128xf32>
    %65 = vector.broadcast %64 : vector<1x128xf32> to vector<32x128xf32>
    %66 = arith.addf %63, %65 : vector<32x128xf32>
    %c0_33 = arith.constant 0 : index
    %c0_34 = arith.constant 0 : index
    %67 = vector.load %arg14[%c0_33, %c0_34] : memref<1x128xf32, #tpu.memory_space<vmem>>, vector<1x128xf32>
    %cst_35 = arith.constant 0.000000e+00 : f32
    %68 = vector.broadcast %cst_35 : f32 to vector<32x128xf32>
    %69 = arith.cmpf oge, %66, %68 : vector<32x128xf32>
    %70 = vector.broadcast %67 : vector<1x128xf32> to vector<32x128xf32>
    %71 = arith.mulf %70, %66 : vector<32x128xf32>
    %72 = arith.select %69, %66, %71 : vector<32x128xi1>, vector<32x128xf32>
    %73 = arith.truncf %72 : vector<32x128xf32> to vector<32x128xbf16>
    %c0_36 = arith.constant 0 : index
    %c0_37 = arith.constant 0 : index
    %74 = vector.load %arg15[%c0_36, %c0_37] : memref<128x128xbf16, #tpu.memory_space<vmem>>, vector<128x128xbf16>
    %cst_38 = arith.constant dense<0.000000e+00> : vector<32x128xf32>
    %75 = tpu.matmul %73, %74, %cst_38 {dimension_numbers = #tpu.dot_dimension_numbers<[1], [0], [0], [1], [0, 0, 1, 1], [], []>} : vector<32x128xbf16>, vector<128x128xbf16>, vector<32x128xf32> -> vector<32x128xf32>
    %c0_39 = arith.constant 0 : index
    %c0_40 = arith.constant 0 : index
    %76 = vector.load %arg16[%c0_39, %c0_40] : memref<1x128xf32, #tpu.memory_space<vmem>>, vector<1x128xf32>
    %77 = vector.broadcast %76 : vector<1x128xf32> to vector<32x128xf32>
    %78 = arith.addf %75, %77 : vector<32x128xf32>
    %79 = vector.extract_strided_slice %78 {offsets = [0, 0], sizes = [16, 128], strides = [1, 1]} : vector<32x128xf32> to vector<16x128xf32>
    %80 = vector.extract_strided_slice %78 {offsets = [16, 0], sizes = [16, 128], strides = [1, 1]} : vector<32x128xf32> to vector<16x128xf32>
    %81 = vector.extract_strided_slice %60 {offsets = [0, 0], sizes = [16, 128], strides = [1, 1]} : vector<32x128xf32> to vector<16x128xf32>
    %82 = vector.extract_strided_slice %60 {offsets = [16, 0], sizes = [16, 128], strides = [1, 1]} : vector<32x128xf32> to vector<16x128xf32>
    %83 = arith.mulf %79, %79 : vector<16x128xf32>
    %cst_41 = arith.constant dense<0.000000e+00> : vector<16xf32>
    %84 = vector.multi_reduction <add>, %83, %cst_41 [1] : vector<16x128xf32> to vector<16xf32>
    %85 = vector.shape_cast %84 : vector<16xf32> to vector<16x1xf32>
    %86 = math.sqrt %85 : vector<16x1xf32>
    %cst_42 = arith.constant 9.99999996E-13 : f32
    %87 = vector.broadcast %cst_42 : f32 to vector<16x1xf32>
    %88 = arith.maximumf %86, %87 : vector<16x1xf32>
    %89 = arith.mulf %82, %82 : vector<16x128xf32>
    %cst_43 = arith.constant dense<0.000000e+00> : vector<16xf32>
    %90 = vector.multi_reduction <add>, %89, %cst_43 [1] : vector<16x128xf32> to vector<16xf32>
    %91 = vector.shape_cast %90 : vector<16xf32> to vector<16x1xf32>
    %92 = math.sqrt %91 : vector<16x1xf32>
    %cst_44 = arith.constant 9.99999996E-13 : f32
    %93 = vector.broadcast %cst_44 : f32 to vector<16x1xf32>
    %94 = arith.maximumf %92, %93 : vector<16x1xf32>
    %95 = arith.mulf %79, %82 : vector<16x128xf32>
    %cst_45 = arith.constant dense<0.000000e+00> : vector<16xf32>
    %96 = vector.multi_reduction <add>, %95, %cst_45 [1] : vector<16x128xf32> to vector<16xf32>
    %97 = vector.shape_cast %96 : vector<16xf32> to vector<16x1xf32>
    %cst_46 = arith.constant 2.000000e+00 : f32
    %98 = vector.broadcast %cst_46 : f32 to vector<16x1xf32>
    %99 = arith.mulf %98, %97 : vector<16x1xf32>
    %100 = arith.mulf %88, %94 : vector<16x1xf32>
    %101 = arith.divf %99, %100 : vector<16x1xf32>
    %cst_47 = arith.constant 2.000000e+00 : f32
    %102 = vector.broadcast %cst_47 : f32 to vector<16x1xf32>
    %103 = arith.subf %102, %101 : vector<16x1xf32>
    %104 = arith.mulf %80, %80 : vector<16x128xf32>
    %cst_48 = arith.constant dense<0.000000e+00> : vector<16xf32>
    %105 = vector.multi_reduction <add>, %104, %cst_48 [1] : vector<16x128xf32> to vector<16xf32>
    %106 = vector.shape_cast %105 : vector<16xf32> to vector<16x1xf32>
    %107 = math.sqrt %106 : vector<16x1xf32>
    %cst_49 = arith.constant 9.99999996E-13 : f32
    %108 = vector.broadcast %cst_49 : f32 to vector<16x1xf32>
    %109 = arith.maximumf %107, %108 : vector<16x1xf32>
    %110 = arith.mulf %81, %81 : vector<16x128xf32>
    %cst_50 = arith.constant dense<0.000000e+00> : vector<16xf32>
    %111 = vector.multi_reduction <add>, %110, %cst_50 [1] : vector<16x128xf32> to vector<16xf32>
    %112 = vector.shape_cast %111 : vector<16xf32> to vector<16x1xf32>
    %113 = math.sqrt %112 : vector<16x1xf32>
    %cst_51 = arith.constant 9.99999996E-13 : f32
    %114 = vector.broadcast %cst_51 : f32 to vector<16x1xf32>
    %115 = arith.maximumf %113, %114 : vector<16x1xf32>
    %116 = arith.mulf %80, %81 : vector<16x128xf32>
    %cst_52 = arith.constant dense<0.000000e+00> : vector<16xf32>
    %117 = vector.multi_reduction <add>, %116, %cst_52 [1] : vector<16x128xf32> to vector<16xf32>
    %118 = vector.shape_cast %117 : vector<16xf32> to vector<16x1xf32>
    %cst_53 = arith.constant 2.000000e+00 : f32
    %119 = vector.broadcast %cst_53 : f32 to vector<16x1xf32>
    %120 = arith.mulf %119, %118 : vector<16x1xf32>
    %121 = arith.mulf %109, %115 : vector<16x1xf32>
    %122 = arith.divf %120, %121 : vector<16x1xf32>
    %cst_54 = arith.constant 2.000000e+00 : f32
    %123 = vector.broadcast %cst_54 : f32 to vector<16x1xf32>
    %124 = arith.subf %123, %122 : vector<16x1xf32>
    %125 = arith.addf %103, %124 : vector<16x1xf32>
    %126 = tpu.iota {dimensions = array<i32: 0>} : vector<16x1xi32>
    %c16_i32 = arith.constant 16 : i32
    %127 = vector.broadcast %c16_i32 : i32 to vector<16x1xi32>
    %128 = arith.cmpi slt, %126, %127 : vector<16x1xi32>
    %129 = arith.extui %128 : vector<16x1xi1> to vector<16x1xi32>
    %130 = arith.sitofp %129 : vector<16x1xi32> to vector<16x1xf32>
    %131 = arith.mulf %125, %130 : vector<16x1xf32>
    %cst_55 = arith.constant dense<0.000000e+00> : vector<1xf32>
    %132 = vector.multi_reduction <add>, %131, %cst_55 [0] : vector<16x1xf32> to vector<1xf32>
    %133 = vector.shape_cast %132 : vector<1xf32> to vector<1x1xf32>
    %cst_56 = arith.constant 1.600000e+01 : f32
    %134 = vector.broadcast %cst_56 : f32 to vector<1x1xf32>
    %135 = arith.divf %133, %134 : vector<1x1xf32>
    %c0_57 = arith.constant 0 : index
    %c0_58 = arith.constant 0 : index
    %136 = vector.load %arg17[%c0_57, %c0_58] : memref<1x1xf32, #tpu.memory_space<vmem>>, vector<1x1xf32>
    tpu.vector_store %arg17[%c0_57, %c0_58], %135 {strides = array<i32>} : memref<1x1xf32, #tpu.memory_space<vmem>>, vector<1x1xf32>,
    return
  }
  func.func @transform_0(%arg0: i32) -> (i32, i32) {
    %c0_i32 = arith.constant 0 : i32
    %c0_i32_0 = arith.constant 0 : i32
    %c0_i32_1 = arith.constant 0 : i32
    return %c0_i32, %c0_i32_0 : i32, i32
  }
  func.func @transform_1(%arg0: i32) -> (i32, i32) {
    %c0_i32 = arith.constant 0 : i32
    %c0_i32_0 = arith.constant 0 : i32
    %c0_i32_1 = arith.constant 0 : i32
    return %c0_i32, %c0_i32_0 : i32, i32
  }
  func.func @transform_2(%arg0: i32) -> (i32, i32) {
    %c0_i32 = arith.constant 0 : i32
    %c0_i32_0 = arith.constant 0 : i32
    %c0_i32_1 = arith.constant 0 : i32
    return %c0_i32, %c0_i32_0 : i32, i32
  }
  func.func @transform_3(%arg0: i32) -> (i32, i32) {
    %c0_i32 = arith.constant 0 : i32
    %c0_i32_0 = arith.constant 0 : i32
    %c0_i32_1 = arith.constant 0 : i32
    return %c0_i32, %c0_i32_0 : i32, i32
  }
  func.func @transform_4(%arg0: i32) -> (i32, i32) {
    %c0_i32 = arith.constant 0 : i32
    %c0_i32_0 = arith.constant 0 : i32
    %c0_i32_1 = arith.constant 0 : i32
    return %c0_i32, %c0_i32_0 : i32, i32
  }
  func.func @transform_5(%arg0: i32) -> (i32, i32) {
    %c0_i32 = arith.constant 0 : i32
    %c0_i32_0 = arith.constant 0 : i32
    %c0_i32_1 = arith.constant 0 : i32
    return %c0_i32, %c0_i32_0 : i32, i32
  }
  func.func @transform_6(%arg0: i32) -> (i32, i32) {
    %c0_i32 = arith.constant 0 : i32
    %c0_i32_0 = arith.constant 0 : i32
    %c0_i32_1 = arith.constant 0 : i32
    return %c0_i32, %c0_i32_0 : i32, i32
  }
  func.func @transform_7(%arg0: i32) -> (i32, i32) {
    %c0_i32 = arith.constant 0 : i32
    %c0_i32_0 = arith.constant 0 : i32
    %c0_i32_1 = arith.constant 0 : i32
    return %c0_i32, %c0_i32_0 : i32, i32
  }
  func.func @transform_8(%arg0: i32) -> (i32, i32) {
    %c0_i32 = arith.constant 0 : i32
    %c0_i32_0 = arith.constant 0 : i32
    %c0_i32_1 = arith.constant 0 : i32
    return %c0_i32, %c0_i32_0 : i32, i32
  }
  func.func @transform_9(%arg0: i32) -> (i32, i32) {
    %c0_i32 = arith.constant 0 : i32
    %c0_i32_0 = arith.constant 0 : i32
    %c0_i32_1 = arith.constant 0 : i32
    return %c0_i32, %c0_i32_0 : i32, i32
  }
  func.func @transform_10(%arg0: i32) -> (i32, i32) {
    %c0_i32 = arith.constant 0 : i32
    %c0_i32_0 = arith.constant 0 : i32
    %c0_i32_1 = arith.constant 0 : i32
    return %c0_i32, %c0_i32_0 : i32, i32
  }
  func.func @transform_11(%arg0: i32) -> (i32, i32) {
    %c0_i32 = arith.constant 0 : i32
    %c0_i32_0 = arith.constant 0 : i32
    %c0_i32_1 = arith.constant 0 : i32
    return %c0_i32, %c0_i32_0 : i32, i32
  }
  func.func @transform_12(%arg0: i32) -> (i32, i32) {
    %c0_i32 = arith.constant 0 : i32
    %c0_i32_0 = arith.constant 0 : i32
    %c0_i32_1 = arith.constant 0 : i32
    return %c0_i32, %c0_i32_0 : i32, i32
  }
  func.func @transform_13(%arg0: i32) -> (i32, i32) {
    %c0_i32 = arith.constant 0 : i32
    %c0_i32_0 = arith.constant 0 : i32
    %c0_i32_1 = arith.constant 0 : i32
    return %c0_i32, %c0_i32_0 : i32, i32
  }
  func.func @transform_14(%arg0: i32) -> (i32, i32) {
    %c0_i32 = arith.constant 0 : i32
    %c0_i32_0 = arith.constant 0 : i32
    %c0_i32_1 = arith.constant 0 : i32
    return %c0_i32, %c0_i32_0 : i32, i32
  }
  func.func @transform_15(%arg0: i32) -> (i32, i32) {
    %c0_i32 = arith.constant 0 : i32
    %c0_i32_0 = arith.constant 0 : i32
    %c0_i32_1 = arith.constant 0 : i32
    return %c0_i32, %c0_i32_0 : i32, i32
  }
  func.func @transform_16(%arg0: i32) -> (i32, i32) {
    %c0_i32 = arith.constant 0 : i32
    %c0_i32_0 = arith.constant 0 : i32
    %c0_i32_1 = arith.constant 0 : i32
    return %c0_i32, %c0_i32_0 : i32, i32
  }
}

</mosaic_0001>

<llo_original>
// kernel: bgrl_forward.1
$region0: #{bgrl_forward.1}
  #allocation0 [shape = 'u32[]', space=smem, size = 0x4, offset = 0x4, fixed_abs, tag = 'smem constant byte address 0x4 - core index']
  #allocation1 [shape = 'u32[72,128]{1,0:T(1,128)}', space=vmem, size = 0x9000, scoped, tag = 'internal scratch']
  %s0 = inlined_call_operand.vmem [shape: bf16[16,16], index: 0, kind: input, shape index: {}]
  %s1 = inlined_call_operand.vmem [shape: bf16[16,16], index: 1, kind: input, shape index: {}]
  %s2 = inlined_call_operand.vmem [shape: f32[16,1], index: 2, kind: input, shape index: {}]
  %s3 = inlined_call_operand.vmem [shape: f32[16,1], index: 3, kind: input, shape index: {}]
  %s4 = inlined_call_operand.vmem [shape: f32[32,128], index: 4, kind: input, shape index: {}]
  %s5 = inlined_call_operand.vmem [shape: bf16[128,256], index: 5, kind: input, shape index: {}]
  %s6 = inlined_call_operand.vmem [shape: f32[1,256], index: 6, kind: input, shape index: {}]
  %s7 = inlined_call_operand.vmem [shape: f32[1,256], index: 7, kind: input, shape index: {}]
  %s8 = inlined_call_operand.vmem [shape: bf16[256,256], index: 8, kind: input, shape index: {}]
  %s9 = inlined_call_operand.vmem [shape: f32[1,256], index: 9, kind: input, shape index: {}]
  %s10 = inlined_call_operand.vmem [shape: f32[1,256], index: 10, kind: input, shape index: {}]
  %s11 = inlined_call_operand.vmem [shape: bf16[128,128], index: 11, kind: input, shape index: {}]
  %s12 = inlined_call_operand.vmem [shape: f32[1,128], index: 12, kind: input, shape index: {}]
  %s13 = inlined_call_operand.vmem [shape: f32[1,128], index: 13, kind: input, shape index: {}]
  %s14 = inlined_call_operand.vmem [shape: bf16[128,128], index: 14, kind: input, shape index: {}]
  %s15 = inlined_call_operand.vmem [shape: f32[1,128], index: 15, kind: input, shape index: {}]
  %s16 = inlined_call_operand.hbm [shape: f32[1,1], index: 16, kind: output, shape index: {}]
  %s17 = sld [smem:[#allocation0]]
  $region74: #{bgrl_forward.1} parent=0
    _
  %s19 = ssub.s32 1, %s17
  %s20 = scalar_select 0, %s19, %s17
  $region1: #{bgrl_forward.1} parent=0
    #allocation2 [shape = 'u8[512]{0}', space=vmem, size = 0x400, scoped, tag = 'output window, operand 0, single buffered']
    #allocation3 [shape = 's32[1]{0}', space=sflag, size = 0x4, scoped, tag = 'scoped memory for bgrl_forward.1']
    %21 = vsyncpa [#allocation3], 0
    // Predicated region
    $region2: #{bgrl_forward.1} parent=1 // pred_check
      _
    $region3: #{bgrl_forward.1} parent=1 // pred_check_branch
      %23 = sbr.rel (0) target = $region5
    $region4: #{bgrl_forward.1} parent=1 // pred_region
      _
    $region5: #{bgrl_forward.1} parent=1 // pred_fallthru
      _
    // Predicated region
    $region6: #{bgrl_forward.1} parent=1 // pred_check
      _
    $region7: #{bgrl_forward.1} parent=1 // pred_check_branch
      %25 = sbr.rel (0) target = $region9
    $region8: #{bgrl_forward.1} parent=1 // pred_region
      _
    $region9: #{bgrl_forward.1} parent=1 // pred_fallthru
      _
    // Predicated region
    $region10: #{bgrl_forward.1} parent=1 // pred_check
      _
    $region11: #{bgrl_forward.1} parent=1 // pred_check_branch
      %27 = sbr.rel (0) target = $region13
    $region12: #{bgrl_forward.1} parent=1 // pred_region
      _
    $region13: #{bgrl_forward.1} parent=1 // pred_fallthru
      _
    // Predicated region
    $region14: #{bgrl_forward.1} parent=1 // pred_check
      _
    $region15: #{bgrl_forward.1} parent=1 // pred_check_branch
      %29 = sbr.rel (0) target = $region17
    $region16: #{bgrl_forward.1} parent=1 // pred_region
      _
    $region17: #{bgrl_forward.1} parent=1 // pred_fallthru
      _
    // Predicated region
    $region18: #{bgrl_forward.1} parent=1 // pred_check
      _
    $region19: #{bgrl_forward.1} parent=1 // pred_check_branch
      %31 = sbr.rel (0) target = $region21
    $region20: #{bgrl_forward.1} parent=1 // pred_region
      _
    $region21: #{bgrl_forward.1} parent=1 // pred_fallthru
      _
    // Predicated region
    $region22: #{bgrl_forward.1} parent=1 // pred_check
      _
    $region23: #{bgrl_forward.1} parent=1 // pred_check_branch
      %33 = sbr.rel (0) target = $region25
    $region24: #{bgrl_forward.1} parent=1 // pred_region
      _
    $region25: #{bgrl_forward.1} parent=1 // pred_fallthru
      _
    // Predicated region
    $region26: #{bgrl_forward.1} parent=1 // pred_check
      _
    $region27: #{bgrl_forward.1} parent=1 // pred_check_branch
      %35 = sbr.rel (0) target = $region29
    $region28: #{bgrl_forward.1} parent=1 // pred_region
      _
    $region29: #{bgrl_forward.1} parent=1 // pred_fallthru
      _
    // Predicated region
    $region30: #{bgrl_forward.1} parent=1 // pred_check
      _
    $region31: #{bgrl_forward.1} parent=1 // pred_check_branch
      %37 = sbr.rel (0) target = $region33
    $region32: #{bgrl_forward.1} parent=1 // pred_region
      _
    $region33: #{bgrl_forward.1} parent=1 // pred_fallthru
      _
    // Predicated region
    $region34: #{bgrl_forward.1} parent=1 // pred_check
      _
    $region35: #{bgrl_forward.1} parent=1 // pred_check_branch
      %39 = sbr.rel (0) target = $region37
    $region36: #{bgrl_forward.1} parent=1 // pred_region
      _
    $region37: #{bgrl_forward.1} parent=1 // pred_fallthru
      _
    // Predicated region
    $region38: #{bgrl_forward.1} parent=1 // pred_check
      _
    $region39: #{bgrl_forward.1} parent=1 // pred_check_branch
      %41 = sbr.rel (0) target = $region41
    $region40: #{bgrl_forward.1} parent=1 // pred_region
      _
    $region41: #{bgrl_forward.1} parent=1 // pred_fallthru
      _
    // Predicated region
    $region42: #{bgrl_forward.1} parent=1 // pred_check
      _
    $region43: #{bgrl_forward.1} parent=1 // pred_check_branch
      %43 = sbr.rel (0) target = $region45
    $region44: #{bgrl_forward.1} parent=1 // pred_region
      _
    $region45: #{bgrl_forward.1} parent=1 // pred_fallthru
      _
    // Predicated region
    $region46: #{bgrl_forward.1} parent=1 // pred_check
      _
    $region47: #{bgrl_forward.1} parent=1 // pred_check_branch
      %45 = sbr.rel (0) target = $region49
    $region48: #{bgrl_forward.1} parent=1 // pred_region
      _
    $region49: #{bgrl_forward.1} parent=1 // pred_fallthru
      _
    // Predicated region
    $region50: #{bgrl_forward.1} parent=1 // pred_check
      _
    $region51: #{bgrl_forward.1} parent=1 // pred_check_branch
      %47 = sbr.rel (0) target = $region53
    $region52: #{bgrl_forward.1} parent=1 // pred_region
      _
    $region53: #{bgrl_forward.1} parent=1 // pred_fallthru
      _
    // Predicated region
    $region54: #{bgrl_forward.1} parent=1 // pred_check
      _
    $region55: #{bgrl_forward.1} parent=1 // pred_check_branch
      %49 = sbr.rel (0) target = $region57
    $region56: #{bgrl_forward.1} parent=1 // pred_region
      _
    $region57: #{bgrl_forward.1} parent=1 // pred_fallthru
      _
    // Predicated region
    $region58: #{bgrl_forward.1} parent=1 // pred_check
      _
    $region59: #{bgrl_forward.1} parent=1 // pred_check_branch
      %51 = sbr.rel (0) target = $region61
    $region60: #{bgrl_forward.1} parent=1 // pred_region
      _
    $region61: #{bgrl_forward.1} parent=1 // pred_fallthru
      _
    // Predicated region
    $region62: #{bgrl_forward.1} parent=1 // pred_check
      _
    $region63: #{bgrl_forward.1} parent=1 // pred_check_branch
      %53 = sbr.rel (0) target = $region65
    $region64: #{bgrl_forward.1} parent=1 // pred_region
      _
    $region65: #{bgrl_forward.1} parent=1 // pred_fallthru
      _
    %v55 = vld [vmem:[%s0] sm:$0xf]
    %v56 = vld [vmem:[%s0 + $0x4] sm:$0xf]
    %v57 = vld [vmem:[%s1] sm:$0xf]
    %v58 = vld [vmem:[%s1 + $0x4] sm:$0xf]
    %v59 = vld [vmem:[%s2] sm:$0xff]
    %v60 = vld [vmem:[%s2 + $0x8] sm:$0xff]
    %v61 = vld [vmem:[%s3] sm:$0xff]
    %v62 = vld [vmem:[%s3 + $0x8] sm:$0xff]
    %v63 = vld [vmem:[%s4] sm:$0xff]
    %v64 = vld [vmem:[%s4 + $0x8] sm:$0xff]
    %v65 = vld [vmem:[%s4 + $0x10] sm:$0xff]
    %v66 = vld [vmem:[%s4 + $0x18] sm:$0xff]
    %v67 = vpack.c.bf16 %v64, %v63
    %v68 = vpack.c.bf16 %v66, %v65
    %v69 = vld [vmem:[%s5] sm:$0xff]
    %v70 = vld [vmem:[%s5 + $0x8] sm:$0xff]
    %v71 = vld [vmem:[%s5 + $0x10] sm:$0xff]
    %v72 = vld [vmem:[%s5 + $0x18] sm:$0xff]
    %v73 = vld [vmem:[%s5 + $0x20] sm:$0xff]
    %v74 = vld [vmem:[%s5 + $0x28] sm:$0xff]
    %v75 = vld [vmem:[%s5 + $0x30] sm:$0xff]
    %v76 = vld [vmem:[%s5 + $0x38] sm:$0xff]
    %v77 = vld [vmem:[%s5 + $0x40] sm:$0xff]
    %v78 = vld [vmem:[%s5 + $0x48] sm:$0xff]
    %v79 = vld [vmem:[%s5 + $0x50] sm:$0xff]
    %v80 = vld [vmem:[%s5 + $0x58] sm:$0xff]
    %v81 = vld [vmem:[%s5 + $0x60] sm:$0xff]
    %v82 = vld [vmem:[%s5 + $0x68] sm:$0xff]
    %v83 = vld [vmem:[%s5 + $0x70] sm:$0xff]
    %v84 = vld [vmem:[%s5 + $0x78] sm:$0xff]
    %v101 = vunpack.c.l.b16 %v69
    %v102 = vunpack.c.h.b16 %v69
    %v103 = vunpack.c.l.b16 %v70
    %v104 = vunpack.c.h.b16 %v70
    %v105 = vunpack.c.l.b16 %v71
    %v106 = vunpack.c.h.b16 %v71
    %v107 = vunpack.c.l.b16 %v72
    %v108 = vunpack.c.h.b16 %v72
    %v109 = vunpack.c.l.b16 %v73
    %v110 = vunpack.c.h.b16 %v73
    %v111 = vunpack.c.l.b16 %v74
    %v112 = vunpack.c.h.b16 %v74
    %v113 = vunpack.c.l.b16 %v75
    %v114 = vunpack.c.h.b16 %v75
    %v115 = vunpack.c.l.b16 %v76
    %v116 = vunpack.c.h.b16 %v76
    %v117 = vunpack.c.l.b16 %v77
    %v118 = vunpack.c.h.b16 %v77
    %v119 = vunpack.c.l.b16 %v78
    %v120 = vunpack.c.h.b16 %v78
    %v121 = vunpack.c.l.b16 %v79
    %v122 = vunpack.c.h.b16 %v79
    %v123 = vunpack.c.l.b16 %v80
    %v124 = vunpack.c.h.b16 %v80
    %v125 = vunpack.c.l.b16 %v81
    %v126 = vunpack.c.h.b16 %v81
    %v127 = vunpack.c.l.b16 %v82
    %v128 = vunpack.c.h.b16 %v82
    %v129 = vunpack.c.l.b16 %v83
    %v130 = vunpack.c.h.b16 %v83
    %v131 = vunpack.c.l.b16 %v84
    %v132 = vunpack.c.h.b16 %v84
    %v133 = vpack.c.b16 %v103, %v101
    %v134 = vpack.c.b16 %v104, %v102
    %v135 = vpack.c.b16 %v107, %v105
    %v136 = vpack.c.b16 %v108, %v106
    %v137 = vpack.c.b16 %v111, %v109
    %v138 = vpack.c.b16 %v112, %v110
    %v139 = vpack.c.b16 %v115, %v113
    %v140 = vpack.c.b16 %v116, %v114
    %v141 = vpack.c.b16 %v119, %v117
    %v142 = vpack.c.b16 %v120, %v118
    %v143 = vpack.c.b16 %v123, %v121
    %v144 = vpack.c.b16 %v124, %v122
    %v145 = vpack.c.b16 %v127, %v125
    %v146 = vpack.c.b16 %v128, %v126
    %v147 = vpack.c.b16 %v131, %v129
    %v148 = vpack.c.b16 %v132, %v130
    %165 = vmatpush.bf16.msra.mxu0 %v147
    %166 = vmatpush.bf16.msra.mxu0 %v145
    %167 = vmatpush.bf16.msra.mxu0 %v143
    %168 = vmatpush.bf16.msra.mxu0 %v141
    %169 = vmatpush.bf16.msra.mxu0 %v139
    %170 = vmatpush.bf16.msra.mxu0 %v137
    %171 = vmatpush.bf16.msra.mxu0 %v135
    %172 = vmatpush.bf16.msra.mxu0 %v133
    %173 = vmatmul.bf16.gmra.mxu0 %v67
    %v174 = vpop.f32.mrf.mxu0
    %v175 = vadd.f32 0.0, %v174
    %v176 = vpop.f32.mrf.mxu0
    %v177 = vadd.f32 0.0, %v176
    %178 = vmatmul.bf16.gmra.mxu0 %v68
    %v179 = vpop.f32.mrf.mxu0
    %v180 = vadd.f32 0.0, %v179
    %v181 = vpop.f32.mrf.mxu0
    %v182 = vadd.f32 0.0, %v181
    %183 = vdwg.mxu0
    %184 = vmatpush.bf16.msra.mxu0 %v148
    %185 = vmatpush.bf16.msra.mxu0 %v146
    %186 = vmatpush.bf16.msra.mxu0 %v144
    %187 = vmatpush.bf16.msra.mxu0 %v142
    %188 = vmatpush.bf16.msra.mxu0 %v140
    %189 = vmatpush.bf16.msra.mxu0 %v138
    %190 = vmatpush.bf16.msra.mxu0 %v136
    %191 = vmatpush.bf16.msra.mxu0 %v134
    %192 = vmatmul.bf16.gmra.mxu0 %v67
    %v193 = vpop.f32.mrf.mxu0
    %v194 = vadd.f32 0.0, %v193
    %v195 = vpop.f32.mrf.mxu0
    %v196 = vadd.f32 0.0, %v195
    %197 = vmatmul.bf16.gmra.mxu0 %v68
    %v198 = vpop.f32.mrf.mxu0
    %v199 = vadd.f32 0.0, %v198
    %v200 = vpop.f32.mrf.mxu0
    %v201 = vadd.f32 0.0, %v200
    %202 = vdwg.mxu0
    %204 = vset.pattern.permute.xlu0 0
    %205 = vperm.xlu0 %204, %v59
    %v206 = vpop.permute.xlu0 %205
    %209 = vset.pattern.permute.xlu0 0
    %210 = vperm.xlu0 %209, %v60
    %v211 = vpop.permute.xlu0 %210
    %v213 = vmul.f32 %v175, %v206
    %v214 = vmul.f32 %v194, %v206
    %v215 = vmul.f32 %v177, %v211
    %v216 = vmul.f32 %v196, %v211
    %v217 = vpack.c.bf16 %v215, %v213
    %v218 = vpack.c.bf16 %v216, %v214
    %220 = vset.pattern.permute.xlu0 0
    %221 = vperm.xlu0 %220, %v61
    %v222 = vpop.permute.xlu0 %221
    %225 = vset.pattern.permute.xlu0 0
    %226 = vperm.xlu0 %225, %v62
    %v227 = vpop.permute.xlu0 %226
    %v229 = vmul.f32 %v180, %v222
    %v230 = vmul.f32 %v199, %v222
    %v231 = vmul.f32 %v182, %v227
    %v232 = vmul.f32 %v201, %v227
    %v233 = vpack.c.bf16 %v231, %v229
    %v234 = vpack.c.bf16 %v232, %v230
    %v237 = vunpack.c.l.b16 %v55
    %v238 = vunpack.c.l.b16 %v56
    %v239 = vpack.c.b16 %v238, %v237
    %vm240 = vcmask 130048
    %v242 = vsel %vm240, %v239, 0
    %244 = vmatpush.bf16.msra.mxu0 0
    %245 = vmatpush.bf16.msra.mxu0 0
    %246 = vmatpush.bf16.msra.mxu0 0
    %247 = vmatpush.bf16.msra.mxu0 0
    %248 = vmatpush.bf16.msra.mxu0 0
    %249 = vmatpush.bf16.msra.mxu0 0
    %250 = vmatpush.bf16.msra.mxu0 0
    %251 = vmatpush.bf16.msra.mxu0 %v217
    %252 = vmatmul.bf16.gmra.mxu0 %v242
    %v253 = vpop.f32.mrf.mxu0
    %v254 = vadd.f32 0.0, %v253
    %v255 = vpop.f32.mrf.mxu0
    %v256 = vadd.f32 0.0, %v255
    %257 = vdwg.mxu0
    %258 = vmatpush.bf16.msra.mxu0 0
    %259 = vmatpush.bf16.msra.mxu0 0
    %260 = vmatpush.bf16.msra.mxu0 0
    %261 = vmatpush.bf16.msra.mxu0 0
    %262 = vmatpush.bf16.msra.mxu0 0
    %263 = vmatpush.bf16.msra.mxu0 0
    %264 = vmatpush.bf16.msra.mxu0 0
    %265 = vmatpush.bf16.msra.mxu0 %v218
    %266 = vmatmul.bf16.gmra.mxu0 %v242
    %v267 = vpop.f32.mrf.mxu0
    %v268 = vadd.f32 0.0, %v267
    %v269 = vpop.f32.mrf.mxu0
    %v270 = vadd.f32 0.0, %v269
    %271 = vdwg.mxu0
    %v272 = vmul.f32 %v254, %v206
    %v273 = vmul.f32 %v268, %v206
    %v274 = vmul.f32 %v256, %v211
    %v275 = vmul.f32 %v270, %v211
    %v278 = vunpack.c.l.b16 %v57
    %v279 = vunpack.c.l.b16 %v58
    %v280 = vpack.c.b16 %v279, %v278
    %v282 = vsel %vm240, %v280, 0
    %284 = vmatpush.bf16.msra.mxu0 0
    %285 = vmatpush.bf16.msra.mxu0 0
    %286 = vmatpush.bf16.msra.mxu0 0
    %287 = vmatpush.bf16.msra.mxu0 0
    %288 = vmatpush.bf16.msra.mxu0 0
    %289 = vmatpush.bf16.msra.mxu0 0
    %290 = vmatpush.bf16.msra.mxu0 0
    %291 = vmatpush.bf16.msra.mxu0 %v233
    %292 = vmatmul.bf16.gmra.mxu0 %v282
    %v293 = vpop.f32.mrf.mxu0
    %v294 = vadd.f32 0.0, %v293
    %v295 = vpop.f32.mrf.mxu0
    %v296 = vadd.f32 0.0, %v295
    %297 = vdwg.mxu0
    %298 = vmatpush.bf16.msra.mxu0 0
    %299 = vmatpush.bf16.msra.mxu0 0
    %300 = vmatpush.bf16.msra.mxu0 0
    %301 = vmatpush.bf16.msra.mxu0 0
    %302 = vmatpush.bf16.msra.mxu0 0
    %303 = vmatpush.bf16.msra.mxu0 0
    %304 = vmatpush.bf16.msra.mxu0 0
    %305 = vmatpush.bf16.msra.mxu0 %v234
    %306 = vmatmul.bf16.gmra.mxu0 %v282
    %v307 = vpop.f32.mrf.mxu0
    %v308 = vadd.f32 0.0, %v307
    %v309 = vpop.f32.mrf.mxu0
    %v310 = vadd.f32 0.0, %v309
    %311 = vdwg.mxu0
    %v312 = vmul.f32 %v294, %v222
    %v313 = vmul.f32 %v308, %v222
    %v314 = vmul.f32 %v296, %v227
    %v315 = vmul.f32 %v310, %v227
    %v316 = vld [vmem:[%s6] sm:$0x3]
    %v318 = vperm.slane %v316, 0
    %v319 = vperm.slane %v316, 1
    %v322 = vadd.f32 %v272, %v318
    %v323 = vadd.f32 %v273, %v319
    %v324 = vadd.f32 %v274, %v318
    %v325 = vadd.f32 %v275, %v319
    %v326 = vadd.f32 %v312, %v318
    %v327 = vadd.f32 %v313, %v319
    %v328 = vadd.f32 %v314, %v318
    %v329 = vadd.f32 %v315, %v319
    %v330 = vld [vmem:[%s7] sm:$0x3]
    %vm331 = vcmp.ge.f32.partialorder %v322, 0.0
    %vm332 = vcmp.ge.f32.partialorder %v323, 0.0
    %vm333 = vcmp.ge.f32.partialorder %v324, 0.0
    %vm334 = vcmp.ge.f32.partialorder %v325, 0.0
    %vm335 = vcmp.ge.f32.partialorder %v326, 0.0
    %vm336 = vcmp.ge.f32.partialorder %v327, 0.0
    %vm337 = vcmp.ge.f32.partialorder %v328, 0.0
    %vm338 = vcmp.ge.f32.partialorder %v329, 0.0
    %v340 = vperm.slane %v330, 0
    %v341 = vperm.slane %v330, 1
    %v344 = vmul.f32 %v340, %v322
    %v345 = vmul.f32 %v341, %v323
    %v346 = vmul.f32 %v340, %v324
    %v347 = vmul.f32 %v341, %v325
    %v348 = vmul.f32 %v340, %v326
    %v349 = vmul.f32 %v341, %v327
    %v350 = vmul.f32 %v340, %v328
    %v351 = vmul.f32 %v341, %v329
    %v352 = vsel %vm331, %v322, %v344
    %v353 = vsel %vm332, %v323, %v345
    %v354 = vsel %vm333, %v324, %v346
    %v355 = vsel %vm334, %v325, %v347
    %v356 = vsel %vm335, %v326, %v348
    %v357 = vsel %vm336, %v327, %v349
    %v358 = vsel %vm337, %v328, %v350
    %v359 = vsel %vm338, %v329, %v351
    %v360 = vpack.c.bf16 %v354, %v352
    %v361 = vpack.c.bf16 %v355, %v353
    %v362 = vpack.c.bf16 %v358, %v356
    %v363 = vpack.c.bf16 %v359, %v357
    %v364 = vld [vmem:[%s8] sm:$0xff]
    %v365 = vld [vmem:[%s8 + $0x8] sm:$0xff]
    %v366 = vld [vmem:[%s8 + $0x10] sm:$0xff]
    %v367 = vld [vmem:[%s8 + $0x18] sm:$0xff]
    %v368 = vld [vmem:[%s8 + $0x20] sm:$0xff]
    %v369 = vld [vmem:[%s8 + $0x28] sm:$0xff]
    %v370 = vld [vmem:[%s8 + $0x30] sm:$0xff]
    %v371 = vld [vmem:[%s8 + $0x38] sm:$0xff]
    %v372 = vld [vmem:[%s8 + $0x40] sm:$0xff]
    %v373 = vld [vmem:[%s8 + $0x48] sm:$0xff]
    %v374 = vld [vmem:[%s8 + $0x50] sm:$0xff]
    %v375 = vld [vmem:[%s8 + $0x58] sm:$0xff]
    %v376 = vld [vmem:[%s8 + $0x60] sm:$0xff]
    %v377 = vld [vmem:[%s8 + $0x68] sm:$0xff]
    %v378 = vld [vmem:[%s8 + $0x70] sm:$0xff]
    %v379 = vld [vmem:[%s8 + $0x78] sm:$0xff]
    %v380 = vld [vmem:[%s8 + $0x80] sm:$0xff]
    %v381 = vld [vmem:[%s8 + $0x88] sm:$0xff]
    %v382 = vld [vmem:[%s8 + $0x90] sm:$0xff]
    %v383 = vld [vmem:[%s8 + $0x98] sm:$0xff]
    %v384 = vld [vmem:[%s8 + $0xa0] sm:$0xff]
    %v385 = vld [vmem:[%s8 + $0xa8] sm:$0xff]
    %v386 = vld [vmem:[%s8 + $0xb0] sm:$0xff]
    %v387 = vld [vmem:[%s8 + $0xb8] sm:$0xff]
    %v388 = vld [vmem:[%s8 + $0xc0] sm:$0xff]
    %v389 = vld [vmem:[%s8 + $0xc8] sm:$0xff]
    %v390 = vld [vmem:[%s8 + $0xd0] sm:$0xff]
    %v391 = vld [vmem:[%s8 + $0xd8] sm:$0xff]
    %v392 = vld [vmem:[%s8 + $0xe0] sm:$0xff]
    %v393 = vld [vmem:[%s8 + $0xe8] sm:$0xff]
    %v394 = vld [vmem:[%s8 + $0xf0] sm:$0xff]
    %v395 = vld [vmem:[%s8 + $0xf8] sm:$0xff]
    %v428 = vunpack.c.l.b16 %v364
    %v429 = vunpack.c.h.b16 %v364
    %v430 = vunpack.c.l.b16 %v365
    %v431 = vunpack.c.h.b16 %v365
    %v432 = vunpack.c.l.b16 %v366
    %v433 = vunpack.c.h.b16 %v366
    %v434 = vunpack.c.l.b16 %v367
    %v435 = vunpack.c.h.b16 %v367
    %v436 = vunpack.c.l.b16 %v368
    %v437 = vunpack.c.h.b16 %v368
    %v438 = vunpack.c.l.b16 %v369
    %v439 = vunpack.c.h.b16 %v369
    %v440 = vunpack.c.l.b16 %v370
    %v441 = vunpack.c.h.b16 %v370
    %v442 = vunpack.c.l.b16 %v371
    %v443 = vunpack.c.h.b16 %v371
    %v444 = vunpack.c.l.b16 %v372
    %v445 = vunpack.c.h.b16 %v372
    %v446 = vunpack.c.l.b16 %v373
    %v447 = vunpack.c.h.b16 %v373
    %v448 = vunpack.c.l.b16 %v374
    %v449 = vunpack.c.h.b16 %v374
    %v450 = vunpack.c.l.b16 %v375
    %v451 = vunpack.c.h.b16 %v375
    %v452 = vunpack.c.l.b16 %v376
    %v453 = vunpack.c.h.b16 %v376
    %v454 = vunpack.c.l.b16 %v377
    %v455 = vunpack.c.h.b16 %v377
    %v456 = vunpack.c.l.b16 %v378
    %v457 = vunpack.c.h.b16 %v378
    %v458 = vunpack.c.l.b16 %v379
    %v459 = vunpack.c.h.b16 %v379
    %v460 = vunpack.c.l.b16 %v380
    %v461 = vunpack.c.h.b16 %v380
    %v462 = vunpack.c.l.b16 %v381
    %v463 = vunpack.c.h.b16 %v381
    %v464 = vunpack.c.l.b16 %v382
    %v465 = vunpack.c.h.b16 %v382
    %v466 = vunpack.c.l.b16 %v383
    %v467 = vunpack.c.h.b16 %v383
    %v468 = vunpack.c.l.b16 %v384
    %v469 = vunpack.c.h.b16 %v384
    %v470 = vunpack.c.l.b16 %v385
    %v471 = vunpack.c.h.b16 %v385
    %v472 = vunpack.c.l.b16 %v386
    %v473 = vunpack.c.h.b16 %v386
    %v474 = vunpack.c.l.b16 %v387
    %v475 = vunpack.c.h.b16 %v387
    %v476 = vunpack.c.l.b16 %v388
    %v477 = vunpack.c.h.b16 %v388
    %v478 = vunpack.c.l.b16 %v389
    %v479 = vunpack.c.h.b16 %v389
    %v480 = vunpack.c.l.b16 %v390
    %v481 = vunpack.c.h.b16 %v390
    %v482 = vunpack.c.l.b16 %v391
    %v483 = vunpack.c.h.b16 %v391
    %v484 = vunpack.c.l.b16 %v392
    %v485 = vunpack.c.h.b16 %v392
    %v486 = vunpack.c.l.b16 %v393
    %v487 = vunpack.c.h.b16 %v393
    %v488 = vunpack.c.l.b16 %v394
    %v489 = vunpack.c.h.b16 %v394
    %v490 = vunpack.c.l.b16 %v395
    %v491 = vunpack.c.h.b16 %v395
    %v492 = vpack.c.b16 %v430, %v428
    %v493 = vpack.c.b16 %v431, %v429
    %v494 = vpack.c.b16 %v434, %v432
    %v495 = vpack.c.b16 %v435, %v433
    %v496 = vpack.c.b16 %v438, %v436
    %v497 = vpack.c.b16 %v439, %v437
    %v498 = vpack.c.b16 %v442, %v440
    %v499 = vpack.c.b16 %v443, %v441
    %v500 = vpack.c.b16 %v446, %v444
    %v501 = vpack.c.b16 %v447, %v445
    %v502 = vpack.c.b16 %v450, %v448
    %v503 = vpack.c.b16 %v451, %v449
    %v504 = vpack.c.b16 %v454, %v452
    %v505 = vpack.c.b16 %v455, %v453
    %v506 = vpack.c.b16 %v458, %v456
    %v507 = vpack.c.b16 %v459, %v457
    %v508 = vpack.c.b16 %v462, %v460
    %v509 = vpack.c.b16 %v463, %v461
    %v510 = vpack.c.b16 %v466, %v464
    %v511 = vpack.c.b16 %v467, %v465
    %v512 = vpack.c.b16 %v470, %v468
    %v513 = vpack.c.b16 %v471, %v469
    %v514 = vpack.c.b16 %v474, %v472
    %v515 = vpack.c.b16 %v475, %v473
    %v516 = vpack.c.b16 %v478, %v476
    %v517 = vpack.c.b16 %v479, %v477
    %v518 = vpack.c.b16 %v482, %v480
    %v519 = vpack.c.b16 %v483, %v481
    %v520 = vpack.c.b16 %v486, %v484
    %v521 = vpack.c.b16 %v487, %v485
    %v522 = vpack.c.b16 %v490, %v488
    %v523 = vpack.c.b16 %v491, %v489
    %556 = vmatpush.bf16.msra.mxu0 %v506
    %557 = vmatpush.bf16.msra.mxu0 %v504
    %558 = vmatpush.bf16.msra.mxu0 %v502
    %559 = vmatpush.bf16.msra.mxu0 %v500
    %560 = vmatpush.bf16.msra.mxu0 %v498
    %561 = vmatpush.bf16.msra.mxu0 %v496
    %562 = vmatpush.bf16.msra.mxu0 %v494
    %563 = vmatpush.bf16.msra.mxu0 %v492
    %564 = vmatmul.bf16.gmra.mxu0 %v360
    %v565 = vpop.f32.mrf.mxu0
    %v566 = vadd.f32 0.0, %v565
    %v567 = vpop.f32.mrf.mxu0
    %v568 = vadd.f32 0.0, %v567
    %569 = vmatmul.bf16.gmra.mxu0 %v362
    %v570 = vpop.f32.mrf.mxu0
    %v571 = vadd.f32 0.0, %v570
    %v572 = vpop.f32.mrf.mxu0
    %v573 = vadd.f32 0.0, %v572
    %574 = vdwg.mxu0
    %575 = vmatpush.bf16.msra.mxu0 %v522
    %576 = vmatpush.bf16.msra.mxu0 %v520
    %577 = vmatpush.bf16.msra.mxu0 %v518
    %578 = vmatpush.bf16.msra.mxu0 %v516
    %579 = vmatpush.bf16.msra.mxu0 %v514
    %580 = vmatpush.bf16.msra.mxu0 %v512
    %581 = vmatpush.bf16.msra.mxu0 %v510
    %582 = vmatpush.bf16.msra.mxu0 %v508
    %583 = vmatmul.bf16.gmra.mxu0 %v361
    %v584 = vpop.f32.mrf.mxu0
    %v585 = vadd.f32 %v566, %v584
    %v586 = vpop.f32.mrf.mxu0
    %v587 = vadd.f32 %v568, %v586
    %588 = vmatmul.bf16.gmra.mxu0 %v363
    %v589 = vpop.f32.mrf.mxu0
    %v590 = vadd.f32 %v571, %v589
    %v591 = vpop.f32.mrf.mxu0
    %v592 = vadd.f32 %v573, %v591
    %593 = vdwg.mxu0
    %594 = vmatpush.bf16.msra.mxu0 %v507
    %595 = vmatpush.bf16.msra.mxu0 %v505
    %596 = vmatpush.bf16.msra.mxu0 %v503
    %597 = vmatpush.bf16.msra.mxu0 %v501
    %598 = vmatpush.bf16.msra.mxu0 %v499
    %599 = vmatpush.bf16.msra.mxu0 %v497
    %600 = vmatpush.bf16.msra.mxu0 %v495
    %601 = vmatpush.bf16.msra.mxu0 %v493
    %602 = vmatmul.bf16.gmra.mxu0 %v360
    %v603 = vpop.f32.mrf.mxu0
    %v604 = vadd.f32 0.0, %v603
    %v605 = vpop.f32.mrf.mxu0
    %v606 = vadd.f32 0.0, %v605
    %607 = vmatmul.bf16.gmra.mxu0 %v362
    %v608 = vpop.f32.mrf.mxu0
    %v609 = vadd.f32 0.0, %v608
    %v610 = vpop.f32.mrf.mxu0
    %v611 = vadd.f32 0.0, %v610
    %612 = vdwg.mxu0
    %613 = vmatpush.bf16.msra.mxu0 %v523
    %614 = vmatpush.bf16.msra.mxu0 %v521
    %615 = vmatpush.bf16.msra.mxu0 %v519
    %616 = vmatpush.bf16.msra.mxu0 %v517
    %617 = vmatpush.bf16.msra.mxu0 %v515
    %618 = vmatpush.bf16.msra.mxu0 %v513
    %619 = vmatpush.bf16.msra.mxu0 %v511
    %620 = vmatpush.bf16.msra.mxu0 %v509
    %621 = vmatmul.bf16.gmra.mxu0 %v361
    %v622 = vpop.f32.mrf.mxu0
    %v623 = vadd.f32 %v604, %v622
    %v624 = vpop.f32.mrf.mxu0
    %v625 = vadd.f32 %v606, %v624
    %626 = vmatmul.bf16.gmra.mxu0 %v363
    %v627 = vpop.f32.mrf.mxu0
    %v628 = vadd.f32 %v609, %v627
    %v629 = vpop.f32.mrf.mxu0
    %v630 = vadd.f32 %v611, %v629
    %631 = vdwg.mxu0
    %v632 = vmul.f32 %v585, %v206
    %v633 = vmul.f32 %v623, %v206
    %v634 = vmul.f32 %v587, %v211
    %v635 = vmul.f32 %v625, %v211
    %v636 = vpack.c.bf16 %v634, %v632
    %v637 = vpack.c.bf16 %v635, %v633
    %v638 = vmul.f32 %v590, %v222
    %v639 = vmul.f32 %v628, %v222
    %v640 = vmul.f32 %v592, %v227
    %v641 = vmul.f32 %v630, %v227
    %v642 = vpack.c.bf16 %v640, %v638
    %v643 = vpack.c.bf16 %v641, %v639
    %644 = vmatpush.bf16.msra.mxu0 0
    %645 = vmatpush.bf16.msra.mxu0 0
    %646 = vmatpush.bf16.msra.mxu0 0
    %647 = vmatpush.bf16.msra.mxu0 0
    %648 = vmatpush.bf16.msra.mxu0 0
    %649 = vmatpush.bf16.msra.mxu0 0
    %650 = vmatpush.bf16.msra.mxu0 0
    %651 = vmatpush.bf16.msra.mxu0 %v636
    %652 = vmatmul.bf16.gmra.mxu0 %v242
    %v653 = vpop.f32.mrf.mxu0
    %v654 = vadd.f32 0.0, %v653
    %v655 = vpop.f32.mrf.mxu0
    %v656 = vadd.f32 0.0, %v655
    %657 = vdwg.mxu0
    %658 = vmatpush.bf16.msra.mxu0 0
    %659 = vmatpush.bf16.msra.mxu0 0
    %660 = vmatpush.bf16.msra.mxu0 0
    %661 = vmatpush.bf16.msra.mxu0 0
    %662 = vmatpush.bf16.msra.mxu0 0
    %663 = vmatpush.bf16.msra.mxu0 0
    %664 = vmatpush.bf16.msra.mxu0 0
    %665 = vmatpush.bf16.msra.mxu0 %v637
    %666 = vmatmul.bf16.gmra.mxu0 %v242
    %v667 = vpop.f32.mrf.mxu0
    %v668 = vadd.f32 0.0, %v667
    %v669 = vpop.f32.mrf.mxu0
    %v670 = vadd.f32 0.0, %v669
    %671 = vdwg.mxu0
    %v672 = vmul.f32 %v654, %v206
    %v673 = vmul.f32 %v668, %v206
    %v674 = vmul.f32 %v656, %v211
    %v675 = vmul.f32 %v670, %v211
    %676 = vmatpush.bf16.msra.mxu0 0
    %677 = vmatpush.bf16.msra.mxu0 0
    %678 = vmatpush.bf16.msra.mxu0 0
    %679 = vmatpush.bf16.msra.mxu0 0
    %680 = vmatpush.bf16.msra.mxu0 0
    %681 = vmatpush.bf16.msra.mxu0 0
    %682 = vmatpush.bf16.msra.mxu0 0
    %683 = vmatpush.bf16.msra.mxu0 %v642
    %684 = vmatmul.bf16.gmra.mxu0 %v282
    %v685 = vpop.f32.mrf.mxu0
    %v686 = vadd.f32 0.0, %v685
    %v687 = vpop.f32.mrf.mxu0
    %v688 = vadd.f32 0.0, %v687
    %689 = vdwg.mxu0
    %690 = vmatpush.bf16.msra.mxu0 0
    %691 = vmatpush.bf16.msra.mxu0 0
    %692 = vmatpush.bf16.msra.mxu0 0
    %693 = vmatpush.bf16.msra.mxu0 0
    %694 = vmatpush.bf16.msra.mxu0 0
    %695 = vmatpush.bf16.msra.mxu0 0
    %696 = vmatpush.bf16.msra.mxu0 0
    %697 = vmatpush.bf16.msra.mxu0 %v643
    %698 = vmatmul.bf16.gmra.mxu0 %v282
    %v699 = vpop.f32.mrf.mxu0
    %v700 = vadd.f32 0.0, %v699
    %v701 = vpop.f32.mrf.mxu0
    %v702 = vadd.f32 0.0, %v701
    %703 = vdwg.mxu0
    %v704 = vmul.f32 %v686, %v222
    %v705 = vmul.f32 %v700, %v222
    %v706 = vmul.f32 %v688, %v227
    %v707 = vmul.f32 %v702, %v227
    %v708 = vld [vmem:[%s9] sm:$0x3]
    %v710 = vperm.slane %v708, 0
    %v711 = vperm.slane %v708, 1
    %v714 = vadd.f32 %v672, %v710
    %v715 = vadd.f32 %v673, %v711
    %v716 = vadd.f32 %v674, %v710
    %v717 = vadd.f32 %v675, %v711
    %v718 = vadd.f32 %v704, %v710
    %v719 = vadd.f32 %v705, %v711
    %v720 = vadd.f32 %v706, %v710
    %v721 = vadd.f32 %v707, %v711
    %v722 = vld [vmem:[%s10] sm:$0x3]
    %vm723 = vcmp.ge.f32.partialorder %v714, 0.0
    %vm724 = vcmp.ge.f32.partialorder %v715, 0.0
    %vm725 = vcmp.ge.f32.partialorder %v716, 0.0
    %vm726 = vcmp.ge.f32.partialorder %v717, 0.0
    %vm727 = vcmp.ge.f32.partialorder %v718, 0.0
    %vm728 = vcmp.ge.f32.partialorder %v719, 0.0
    %vm729 = vcmp.ge.f32.partialorder %v720, 0.0
    %vm730 = vcmp.ge.f32.partialorder %v721, 0.0
    %v732 = vperm.slane %v722, 0
    %v733 = vperm.slane %v722, 1
    %v736 = vmul.f32 %v732, %v714
    %v737 = vmul.f32 %v733, %v715
    %v738 = vmul.f32 %v732, %v716
    %v739 = vmul.f32 %v733, %v717
    %v740 = vmul.f32 %v732, %v718
    %v741 = vmul.f32 %v733, %v719
    %v742 = vmul.f32 %v732, %v720
    %v743 = vmul.f32 %v733, %v721
    %v744 = vsel %vm723, %v714, %v736
    %v745 = vsel %vm724, %v715, %v737
    %v746 = vsel %vm725, %v716, %v738
    %v747 = vsel %vm726, %v717, %v739
    %v748 = vsel %vm727, %v718, %v740
    %v749 = vsel %vm728, %v719, %v741
    %v750 = vsel %vm729, %v720, %v742
    %v751 = vsel %vm730, %v721, %v743
    %v752 = vpack.c.bf16 %v746, %v744
    %v753 = vpack.c.bf16 %v750, %v748
    %v754 = vld [vmem:[%s11] sm:$0xf]
    %v755 = vld [vmem:[%s11 + $0x4] sm:$0xf]
    %v756 = vld [vmem:[%s11 + $0x8] sm:$0xf]
    %v757 = vld [vmem:[%s11 + $0xc] sm:$0xf]
    %v758 = vld [vmem:[%s11 + $0x10] sm:$0xf]
    %v759 = vld [vmem:[%s11 + $0x14] sm:$0xf]
    %v760 = vld [vmem:[%s11 + $0x18] sm:$0xf]
    %v761 = vld [vmem:[%s11 + $0x1c] sm:$0xf]
    %v762 = vld [vmem:[%s11 + $0x20] sm:$0xf]
    %v763 = vld [vmem:[%s11 + $0x24] sm:$0xf]
    %v764 = vld [vmem:[%s11 + $0x28] sm:$0xf]
    %v765 = vld [vmem:[%s11 + $0x2c] sm:$0xf]
    %v766 = vld [vmem:[%s11 + $0x30] sm:$0xf]
    %v767 = vld [vmem:[%s11 + $0x34] sm:$0xf]
    %v768 = vld [vmem:[%s11 + $0x38] sm:$0xf]
    %v769 = vld [vmem:[%s11 + $0x3c] sm:$0xf]
    %v770 = vld [vmem:[%s12] sm:$0x1]
    %v772 = vperm.slane %v770, 0
    %v790 = vunpack.c.l.b16 %v754
    %v791 = vunpack.c.l.b16 %v755
    %v792 = vunpack.c.l.b16 %v756
    %v793 = vunpack.c.l.b16 %v757
    %v794 = vunpack.c.l.b16 %v758
    %v795 = vunpack.c.l.b16 %v759
    %v796 = vunpack.c.l.b16 %v760
    %v797 = vunpack.c.l.b16 %v761
    %v798 = vunpack.c.l.b16 %v762
    %v799 = vunpack.c.l.b16 %v763
    %v800 = vunpack.c.l.b16 %v764
    %v801 = vunpack.c.l.b16 %v765
    %v802 = vunpack.c.l.b16 %v766
    %v803 = vunpack.c.l.b16 %v767
    %v804 = vunpack.c.l.b16 %v768
    %v805 = vunpack.c.l.b16 %v769
    %v806 = vpack.c.b16 %v791, %v790
    %v807 = vpack.c.b16 %v793, %v792
    %v808 = vpack.c.b16 %v795, %v794
    %v809 = vpack.c.b16 %v797, %v796
    %v810 = vpack.c.b16 %v799, %v798
    %v811 = vpack.c.b16 %v801, %v800
    %v812 = vpack.c.b16 %v803, %v802
    %v813 = vpack.c.b16 %v805, %v804
    %822 = vmatpush.bf16.msra.mxu0 %v813
    %823 = vmatpush.bf16.msra.mxu0 %v812
    %824 = vmatpush.bf16.msra.mxu0 %v811
    %825 = vmatpush.bf16.msra.mxu0 %v810
    %826 = vmatpush.bf16.msra.mxu0 %v809
    %827 = vmatpush.bf16.msra.mxu0 %v808
    %828 = vmatpush.bf16.msra.mxu0 %v807
    %829 = vmatpush.bf16.msra.mxu0 %v806
    %830 = vmatmul.bf16.gmra.mxu0 %v752
    %v831 = vpop.f32.mrf.mxu0
    %v832 = vadd.f32 %v772, %v831
    %v833 = vpop.f32.mrf.mxu0
    %v834 = vadd.f32 %v772, %v833
    %835 = vmatmul.bf16.gmra.mxu0 %v753
    %v836 = vpop.f32.mrf.mxu0
    %v837 = vadd.f32 %v772, %v836
    %v838 = vpop.f32.mrf.mxu0
    %v839 = vadd.f32 %v772, %v838
    %840 = vdwg.mxu0
    %v841 = vld [vmem:[%s13] sm:$0x1]
    %vm842 = vcmp.ge.f32.partialorder %v832, 0.0
    %vm843 = vcmp.ge.f32.partialorder %v834, 0.0
    %vm844 = vcmp.ge.f32.partialorder %v837, 0.0
    %vm845 = vcmp.ge.f32.partialorder %v839, 0.0
    %v847 = vperm.slane %v841, 0
    %v849 = vmul.f32 %v847, %v832
    %v850 = vmul.f32 %v847, %v834
    %v851 = vmul.f32 %v847, %v837
    %v852 = vmul.f32 %v847, %v839
    %v853 = vsel %vm842, %v832, %v849
    %v854 = vsel %vm843, %v834, %v850
    %v855 = vsel %vm844, %v837, %v851
    %v856 = vsel %vm845, %v839, %v852
    %v857 = vpack.c.bf16 %v854, %v853
    %v858 = vpack.c.bf16 %v856, %v855
    %v859 = vld [vmem:[%s14] sm:$0xf]
    %v860 = vld [vmem:[%s14 + $0x4] sm:$0xf]
    %v861 = vld [vmem:[%s14 + $0x8] sm:$0xf]
    %v862 = vld [vmem:[%s14 + $0xc] sm:$0xf]
    %v863 = vld [vmem:[%s14 + $0x10] sm:$0xf]
    %v864 = vld [vmem:[%s14 + $0x14] sm:$0xf]
    %v865 = vld [vmem:[%s14 + $0x18] sm:$0xf]
    %v866 = vld [vmem:[%s14 + $0x1c] sm:$0xf]
    %v867 = vld [vmem:[%s14 + $0x20] sm:$0xf]
    %v868 = vld [vmem:[%s14 + $0x24] sm:$0xf]
    %v869 = vld [vmem:[%s14 + $0x28] sm:$0xf]
    %v870 = vld [vmem:[%s14 + $0x2c] sm:$0xf]
    %v871 = vld [vmem:[%s14 + $0x30] sm:$0xf]
    %v872 = vld [vmem:[%s14 + $0x34] sm:$0xf]
    %v873 = vld [vmem:[%s14 + $0x38] sm:$0xf]
    %v874 = vld [vmem:[%s14 + $0x3c] sm:$0xf]
    %v875 = vld [vmem:[%s15] sm:$0x1]
    %v877 = vperm.slane %v875, 0
    %v895 = vunpack.c.l.b16 %v859
    %v896 = vunpack.c.l.b16 %v860
    %v897 = vunpack.c.l.b16 %v861
    %v898 = vunpack.c.l.b16 %v862
    %v899 = vunpack.c.l.b16 %v863
    %v900 = vunpack.c.l.b16 %v864
    %v901 = vunpack.c.l.b16 %v865
    %v902 = vunpack.c.l.b16 %v866
    %v903 = vunpack.c.l.b16 %v867
    %v904 = vunpack.c.l.b16 %v868
    %v905 = vunpack.c.l.b16 %v869
    %v906 = vunpack.c.l.b16 %v870
    %v907 = vunpack.c.l.b16 %v871
    %v908 = vunpack.c.l.b16 %v872
    %v909 = vunpack.c.l.b16 %v873
    %v910 = vunpack.c.l.b16 %v874
    %v911 = vpack.c.b16 %v896, %v895
    %v912 = vpack.c.b16 %v898, %v897
    %v913 = vpack.c.b16 %v900, %v899
    %v914 = vpack.c.b16 %v902, %v901
    %v915 = vpack.c.b16 %v904, %v903
    %v916 = vpack.c.b16 %v906, %v905
    %v917 = vpack.c.b16 %v908, %v907
    %v918 = vpack.c.b16 %v910, %v909
    %927 = vmatpush.bf16.msra.mxu0 %v918
    %928 = vmatpush.bf16.msra.mxu0 %v917
    %929 = vmatpush.bf16.msra.mxu0 %v916
    %930 = vmatpush.bf16.msra.mxu0 %v915
    %931 = vmatpush.bf16.msra.mxu0 %v914
    %932 = vmatpush.bf16.msra.mxu0 %v913
    %933 = vmatpush.bf16.msra.mxu0 %v912
    %934 = vmatpush.bf16.msra.mxu0 %v911
    %935 = vmatmul.bf16.gmra.mxu0 %v857
    %v936 = vpop.f32.mrf.mxu0
    %v937 = vadd.f32 %v877, %v936
    %v938 = vpop.f32.mrf.mxu0
    %v939 = vadd.f32 %v877, %v938
    %940 = vmatmul.bf16.gmra.mxu0 %v858
    %v941 = vpop.f32.mrf.mxu0
    %v942 = vadd.f32 %v877, %v941
    %v943 = vpop.f32.mrf.mxu0
    %v944 = vadd.f32 %v877, %v943
    %945 = vdwg.mxu0
    %v946 = vmul.f32 %v937, %v937
    %v947 = vmul.f32 %v939, %v939
    %948 = vadd.xlane.f32.xlu0 %v946
    %v949 = vpop.xlane.xlu0 %948
    %950 = vadd.xlane.f32.xlu0 %v947
    %v951 = vpop.xlane.xlu0 %950
    %v952 = vrsqrt.pop %v949
    %v953 = vmul.f32 %v952, %v949
    %v954 = vmul.f32 %v953, %v952
    %v955 = vmul.f32 0.5, %v954
    %v956 = vsub.f32 1.5, %v955
    %v957 = vmul.f32 %v952, %v956
    %v958 = vmul.f32 %v949, %v957
    %vm959 = vcmp.eq.f32.partialorder %v949, inf
    %v960 = vsel %vm959, %v949, %v958
    %vm961 = vcmp.eq.f32.partialorder %v949, 0.0
    %v962 = vand.u32 %v949, 2147483648
    %v963 = vsel %vm961, %v962, %v960
    %v964 = vrsqrt.pop %v951
    %v965 = vmul.f32 %v964, %v951
    %v966 = vmul.f32 %v965, %v964
    %v967 = vmul.f32 0.5, %v966
    %v968 = vsub.f32 1.5, %v967
    %v969 = vmul.f32 %v964, %v968
    %v970 = vmul.f32 %v951, %v969
    %vm971 = vcmp.eq.f32.partialorder %v951, inf
    %v972 = vsel %vm971, %v951, %v970
    %vm973 = vcmp.eq.f32.partialorder %v951, 0.0
    %v974 = vand.u32 %v951, 2147483648
    %v975 = vsel %vm973, %v974, %v972
    %v976 = vmax.f32 %v963, 1e-12
    %v977 = vmax.f32 %v975, 1e-12
    %v978 = vmul.f32 %v749, %v749
    %v979 = vmul.f32 %v751, %v751
    %980 = vadd.xlane.f32.xlu0 %v978
    %v981 = vpop.xlane.xlu0 %980
    %982 = vadd.xlane.f32.xlu0 %v979
    %v983 = vpop.xlane.xlu0 %982
    %v984 = vrsqrt.pop %v981
    %v985 = vmul.f32 %v984, %v981
    %v986 = vmul.f32 %v985, %v984
    %v987 = vmul.f32 0.5, %v986
    %v988 = vsub.f32 1.5, %v987
    %v989 = vmul.f32 %v984, %v988
    %v990 = vmul.f32 %v981, %v989
    %vm991 = vcmp.eq.f32.partialorder %v981, inf
    %v992 = vsel %vm991, %v981, %v990
    %vm993 = vcmp.eq.f32.partialorder %v981, 0.0
    %v994 = vand.u32 %v981, 2147483648
    %v995 = vsel %vm993, %v994, %v992
    %v996 = vrsqrt.pop %v983
    %v997 = vmul.f32 %v996, %v983
    %v998 = vmul.f32 %v997, %v996
    %v999 = vmul.f32 0.5, %v998
    %v1000 = vsub.f32 1.5, %v999
    %v1001 = vmul.f32 %v996, %v1000
    %v1002 = vmul.f32 %v983, %v1001
    %vm1003 = vcmp.eq.f32.partialorder %v983, inf
    %v1004 = vsel %vm1003, %v983, %v1002
    %vm1005 = vcmp.eq.f32.partialorder %v983, 0.0
    %v1006 = vand.u32 %v983, 2147483648
    %v1007 = vsel %vm1005, %v1006, %v1004
    %v1008 = vmax.f32 %v995, 1e-12
    %v1009 = vmax.f32 %v1007, 1e-12
    %v1010 = vmul.f32 %v937, %v749
    %v1011 = vmul.f32 %v939, %v751
    %1012 = vadd.xlane.f32.xlu0 %v1010
    %v1013 = vpop.xlane.xlu0 %1012
    %1014 = vadd.xlane.f32.xlu0 %v1011
    %v1015 = vpop.xlane.xlu0 %1014
    %v1016 = vmul.f32 %v1013, 2.0
    %v1017 = vmul.f32 %v1015, 2.0
    %v1018 = vmul.f32 %v976, %v1008
    %v1019 = vmul.f32 %v977, %v1009
    %v1020 = vrcp.pop %v1018
    %v1021 = vmul.f32 %v1018, %v1020
    %v1022 = vsub.f32 1.0, %v1021
    %v1023 = vmul.f32 %v1020, %v1022
    %v1024 = vadd.f32 %v1020, %v1023
    %vm1025 = vweird.f32 %v1018
    %vm1026 = vweird.f32 %v1020
    %vm1027 = vmor %vm1025, %vm1026
    %v1028 = vsel %vm1027, %v1020, %v1024
    %v1029 = vand.u32 2147483647, %v1018
    %vm1030 = vcmp.eq.f32.partialorder %v1029, 8.507059e+37
    %v1031 = vand.u32 %v1018, 2147483648
    %v1032 = vor.u32 1.1754944e-38, %v1031
    %v1033 = vsel %vm1030, %v1032, %v1028
    %v1034 = vmul.f32 %v1016, %v1033
    %v1035 = vrcp.pop %v1019
    %v1036 = vmul.f32 %v1019, %v1035
    %v1037 = vsub.f32 1.0, %v1036
    %v1038 = vmul.f32 %v1035, %v1037
    %v1039 = vadd.f32 %v1035, %v1038
    %vm1040 = vweird.f32 %v1019
    %vm1041 = vweird.f32 %v1035
    %vm1042 = vmor %vm1040, %vm1041
    %v1043 = vsel %vm1042, %v1035, %v1039
    %v1044 = vand.u32 2147483647, %v1019
    %vm1045 = vcmp.eq.f32.partialorder %v1044, 8.507059e+37
    %v1046 = vand.u32 %v1019, 2147483648
    %v1047 = vor.u32 1.1754944e-38, %v1046
    %v1048 = vsel %vm1045, %v1047, %v1043
    %v1049 = vmul.f32 %v1017, %v1048
    %v1050 = vsub.f32 2.0, %v1034
    %v1051 = vsub.f32 2.0, %v1049
    %v1052 = vmul.f32 %v942, %v942
    %v1053 = vmul.f32 %v944, %v944
    %1054 = vadd.xlane.f32.xlu0 %v1052
    %v1055 = vpop.xlane.xlu0 %1054
    %1056 = vadd.xlane.f32.xlu0 %v1053
    %v1057 = vpop.xlane.xlu0 %1056
    %v1058 = vrsqrt.pop %v1055
    %v1059 = vmul.f32 %v1058, %v1055
    %v1060 = vmul.f32 %v1059, %v1058
    %v1061 = vmul.f32 0.5, %v1060
    %v1062 = vsub.f32 1.5, %v1061
    %v1063 = vmul.f32 %v1058, %v1062
    %v1064 = vmul.f32 %v1055, %v1063
    %vm1065 = vcmp.eq.f32.partialorder %v1055, inf
    %v1066 = vsel %vm1065, %v1055, %v1064
    %vm1067 = vcmp.eq.f32.partialorder %v1055, 0.0
    %v1068 = vand.u32 %v1055, 2147483648
    %v1069 = vsel %vm1067, %v1068, %v1066
    %v1070 = vrsqrt.pop %v1057
    %v1071 = vmul.f32 %v1070, %v1057
    %v1072 = vmul.f32 %v1071, %v1070
    %v1073 = vmul.f32 0.5, %v1072
    %v1074 = vsub.f32 1.5, %v1073
    %v1075 = vmul.f32 %v1070, %v1074
    %v1076 = vmul.f32 %v1057, %v1075
    %vm1077 = vcmp.eq.f32.partialorder %v1057, inf
    %v1078 = vsel %vm1077, %v1057, %v1076
    %vm1079 = vcmp.eq.f32.partialorder %v1057, 0.0
    %v1080 = vand.u32 %v1057, 2147483648
    %v1081 = vsel %vm1079, %v1080, %v1078
    %v1082 = vmax.f32 %v1069, 1e-12
    %v1083 = vmax.f32 %v1081, 1e-12
    %v1084 = vmul.f32 %v745, %v745
    %v1085 = vmul.f32 %v747, %v747
    %1086 = vadd.xlane.f32.xlu0 %v1084
    %v1087 = vpop.xlane.xlu0 %1086
    %1088 = vadd.xlane.f32.xlu0 %v1085
    %v1089 = vpop.xlane.xlu0 %1088
    %v1090 = vrsqrt.pop %v1087
    %v1091 = vmul.f32 %v1090, %v1087
    %v1092 = vmul.f32 %v1091, %v1090
    %v1093 = vmul.f32 0.5, %v1092
    %v1094 = vsub.f32 1.5, %v1093
    %v1095 = vmul.f32 %v1090, %v1094
    %v1096 = vmul.f32 %v1087, %v1095
    %vm1097 = vcmp.eq.f32.partialorder %v1087, inf
    %v1098 = vsel %vm1097, %v1087, %v1096
    %vm1099 = vcmp.eq.f32.partialorder %v1087, 0.0
    %v1100 = vand.u32 %v1087, 2147483648
    %v1101 = vsel %vm1099, %v1100, %v1098
    %v1102 = vrsqrt.pop %v1089
    %v1103 = vmul.f32 %v1102, %v1089
    %v1104 = vmul.f32 %v1103, %v1102
    %v1105 = vmul.f32 0.5, %v1104
    %v1106 = vsub.f32 1.5, %v1105
    %v1107 = vmul.f32 %v1102, %v1106
    %v1108 = vmul.f32 %v1089, %v1107
    %vm1109 = vcmp.eq.f32.partialorder %v1089, inf
    %v1110 = vsel %vm1109, %v1089, %v1108
    %vm1111 = vcmp.eq.f32.partialorder %v1089, 0.0
    %v1112 = vand.u32 %v1089, 2147483648
    %v1113 = vsel %vm1111, %v1112, %v1110
    %v1114 = vmax.f32 %v1101, 1e-12
    %v1115 = vmax.f32 %v1113, 1e-12
    %v1116 = vmul.f32 %v942, %v745
    %v1117 = vmul.f32 %v944, %v747
    %1118 = vadd.xlane.f32.xlu0 %v1116
    %v1119 = vpop.xlane.xlu0 %1118
    %1120 = vadd.xlane.f32.xlu0 %v1117
    %v1121 = vpop.xlane.xlu0 %1120
    %v1122 = vmul.f32 %v1119, 2.0
    %v1123 = vmul.f32 %v1121, 2.0
    %v1124 = vmul.f32 %v1082, %v1114
    %v1125 = vmul.f32 %v1083, %v1115
    %v1126 = vrcp.pop %v1124
    %v1127 = vmul.f32 %v1124, %v1126
    %v1128 = vsub.f32 1.0, %v1127
    %v1129 = vmul.f32 %v1126, %v1128
    %v1130 = vadd.f32 %v1126, %v1129
    %vm1131 = vweird.f32 %v1124
    %vm1132 = vweird.f32 %v1126
    %vm1133 = vmor %vm1131, %vm1132
    %v1134 = vsel %vm1133, %v1126, %v1130
    %v1135 = vand.u32 2147483647, %v1124
    %vm1136 = vcmp.eq.f32.partialorder %v1135, 8.507059e+37
    %v1137 = vand.u32 %v1124, 2147483648
    %v1138 = vor.u32 1.1754944e-38, %v1137
    %v1139 = vsel %vm1136, %v1138, %v1134
    %v1140 = vmul.f32 %v1122, %v1139
    %v1141 = vrcp.pop %v1125
    %v1142 = vmul.f32 %v1125, %v1141
    %v1143 = vsub.f32 1.0, %v1142
    %v1144 = vmul.f32 %v1141, %v1143
    %v1145 = vadd.f32 %v1141, %v1144
    %vm1146 = vweird.f32 %v1125
    %vm1147 = vweird.f32 %v1141
    %vm1148 = vmor %vm1146, %vm1147
    %v1149 = vsel %vm1148, %v1141, %v1145
    %v1150 = vand.u32 2147483647, %v1125
    %vm1151 = vcmp.eq.f32.partialorder %v1150, 8.507059e+37
    %v1152 = vand.u32 %v1125, 2147483648
    %v1153 = vor.u32 1.1754944e-38, %v1152
    %v1154 = vsel %vm1151, %v1153, %v1149
    %v1155 = vmul.f32 %v1123, %v1154
    %v1156 = vsub.f32 2.0, %v1140
    %v1157 = vsub.f32 2.0, %v1155
    %v1158 = vadd.f32 %v1050, %v1156
    %v1159 = vadd.f32 %v1051, %v1157
    %v1160 = vlaneseq
    %v1161 = vshrl.u32 %v1160, 7
    %v1162 = vadd.s32 %v1161, 8
    %vm1163 = vcmp.lt.s32.totalorder %v1161, 16
    %vm1164 = vcmp.lt.s32.totalorder %v1162, 16
    %v1165 = vsel %vm1163, 1, 0
    %v1166 = vsel %vm1164, 1, 0
    %v1167 = vcvt.s32.f32 %v1165
    %v1168 = vcvt.s32.f32 %v1166
    %v1169 = vmul.f32 %v1158, %v1167
    %v1170 = vmul.f32 %v1159, %v1168
    %v1171 = vadd.f32 %v1169, %v1170
    %v1172 = vrot.slane %v1171, 4
    %v1173 = vadd.f32 %v1171, %v1172
    %v1174 = vrot.slane %v1173, 2
    %v1175 = vadd.f32 %v1173, %v1174
    %v1176 = vrot.slane %v1175, 1
    %v1177 = vadd.f32 %v1175, %v1176
    %v1178 = vrcp.pop 16.0
    %v1179 = vmul.f32 16.0, %v1178
    %v1180 = vsub.f32 1.0, %v1179
    %v1181 = vmul.f32 %v1178, %v1180
    %v1182 = vadd.f32 %v1178, %v1181
    %vm1183 = vweird.f32 %v1178
    %v1184 = vsel %vm1183, %v1178, %v1182
    %v1185 = vmul.f32 %v1177, %v1184
    %vm1186 = vcmask 0
    %1187 = vst.msk [vmem:[#allocation2] sm:$0x1] %vm1186, %v1185
    // Predicated region
    $region66: #{bgrl_forward.1} parent=1 // pred_check
      _
    $region67: #{bgrl_forward.1} parent=1 // pred_check_branch
      %1189 = sbr.rel (0) target = $region69
    $region68: #{bgrl_forward.1} parent=1 // pred_region
      %1191 = vsyncadd [#allocation3], 0
      %s1193 = sshll.u32 [#allocation2], 4
      %s1194 = int_to_ptr.vmem [resolvable:$true] %s1193
      %s1195 = sshll.u32 %s16, 4
      %s1196 = int_to_ptr.hbm [resolvable:$true] %s1195
      %1198 = dma.vmem_to_hbm [thread:$0]  %s1194, 16, %s1196, [#allocation3]
    $region69: #{bgrl_forward.1} parent=1 // pred_fallthru
      _
    // Predicated region
    $region70: #{bgrl_forward.1} parent=1 // pred_check
      _
    $region71: #{bgrl_forward.1} parent=1 // pred_check_branch
      %1200 = sbr.rel (0) target = $region73
    $region72: #{bgrl_forward.1} parent=1 // pred_region
      %1202 = dma.done [#allocation3], 16
    $region73: #{bgrl_forward.1} parent=1 // pred_fallthru
      _
    %1203 = vsyncpa [#allocation3], 1

</llo_original>
